<compile_context>
chip_gen: v7x
topology: tpu7x:2x2x1
jax: 0.10.0
libtpu: 0.0.40
codegen_flags: <defaults>
</compile_context>

<pallas_src>
import functools

import jax
import jax.numpy as jnp
from jax import lax
from jax.experimental import pallas as pl
from jax.experimental.pallas import tpu as pltpu


def _freq_sel_kernel(x_ref, m_ref, w_ref, b_ref, *out_refs,
                     k_list, sg, cg, H, W, PR, PW):
    """One (batch, group) tile, all k-levels fused.

    x_ref : (1, cg, (H + 2*PR) * W)  H-replication-padded x, flat over (Hp, W)
    m_ref : (9 + 4*PW + 1, H*W)      precomputed mask bank (conv/pool/edges)
    w_ref : (1, L, 9*cg)             conv weights for this group, lane-dense
    b_ref : (L*sg,)  SMEM            conv biases
    out_refs : L gated-high outputs + final low output, each (1, cg, H*W)
    """
    L = len(k_list)
    HW = H * W
    base = PR * W                      # flat offset of the interior window
    g = pl.program_id(1)

    # mask-bank row layout (must match the wrapper packing)
    POOL_OFF = 9                       # 2*PW+1 rows; row = POOL_OFF + PW + dj
    LM_OFF = POOL_OFF + 2 * PW + 1     # PW left-edge correction masks
    RM_OFF = LM_OFF + PW               # PW right-edge correction masks

    xin = x_ref[0].astype(jnp.float32)                 # (cg, Npad)

    # ---- grouped 3x3 conv (zero padding), all L levels, on the MXU ---------
    slabs = []
    for t in range(9):
        di, dj = t // 3 - 1, t % 3 - 1
        off = di * W + dj
        slabs.append(xin[:, base + off: base + off + HW] * m_ref[t:t + 1, :])
    taps = jnp.concatenate(slabs, axis=0)              # (9*cg, HW)
    fw = jnp.dot(w_ref[0], taps,
                 preferred_element_type=jnp.float32)   # (L, HW)
    fws = [jax.nn.sigmoid(fw[l:l + 1, :] + b_ref[l * sg + g]) * 2.0
           for l in range(L)]

    # ---- chained replication-pad avg-pools + gating (interior only) --------
    pre = xin[:, base: base + HW]                      # original x
    for lvl, k in enumerate(k_list):
        pk = k // 2

        # column (H) pass over a (HW + 2*PW)-wide window; the H-direction
        # replication is already baked into the padded rows of x.
        o0 = base - PW - pk * W
        s = xin[:, o0: o0 + HW + 2 * PW]
        for di in range(-pk + 1, pk + 1):
            o = base - PW + di * W
            s = s + xin[:, o: o + HW + 2 * PW]

        # row (W) pass: static lane-offset slices of the wide column sum,
        # masked where j+dj leaves [0, W) plus edge-replication corrections.
        sh = {}
        for dj in range(-pk, pk + 1):
            sh[dj] = s[:, PW + dj: PW + dj + HW]       # value at position n+dj

        acc = sh[0]
        for dj in range(1, pk + 1):
            acc = acc + sh[dj] * m_ref[POOL_OFF + PW + dj:
                                       POOL_OFF + PW + dj + 1, :]
            acc = acc + sh[-dj] * m_ref[POOL_OFF + PW - dj:
                                        POOL_OFF + PW - dj + 1, :]
        for t in range(pk):
            coef = float(pk - t)
            acc = acc + (coef * m_ref[LM_OFF + t:LM_OFF + t + 1, :]) * sh[-t]
            acc = acc + (coef * m_ref[RM_OFF + t:RM_OFF + t + 1, :]) * sh[t]

        low = acc * (1.0 / float(k * k))
        high = pre - low
        out_refs[lvl][0] = (fws[lvl] * high).astype(out_refs[lvl].dtype)
        pre = low

    out_refs[L][0] = pre.astype(out_refs[L].dtype)


def frequency_selection_forward(x, weights, biases, k_list, spatial_group=1,
                                act="sigmoid"):
    """Returns [gated_high_k0, ..., gated_high_k{L-1}, final_low], all NCHW."""
    b, c, h, w = x.shape
    sg = spatial_group
    if sg > 64:                                   # mirrors the PyTorch module
        sg = c
    assert c % sg == 0, "in_channels must be divisible by spatial_group"
    for k in k_list:
        assert k >= 1 and k % 2 == 1, \
            "even k (incl. default k=2) is ill-defined in the reference"
    assert act == "sigmoid"                       # TODO(synk): softmax variant
    cg = c // sg
    L = len(k_list)
    hw = h * w

    p_rows = max(k // 2 for k in k_list)          # widest pool half-window
    assert p_rows <= w, "pool kernel wider than the image is not supported"
    PR = max(p_rows + 1, 2)                       # replication rows; covers
                                                  # every in-kernel shifted slice
    PW = p_rows                                   # lane border of the column sum
    n_flat = (h + 2 * PR) * w

    # pad each channel group to a multiple of 8 so every f32 vreg is full
    cgp = -(-cg // 8) * 8
    if cgp != cg:
        xg = jnp.pad(x.reshape(b, sg, cg, h, w),
                     ((0, 0), (0, 0), (0, cgp - cg), (0, 0), (0, 0)))
        x_work = xg.reshape(b, sg * cgp, h, w)
        weights = [jnp.pad(wg, ((0, 0), (0, cgp - cg), (0, 0), (0, 0)))
                   for wg in weights]
    else:
        x_work = x
    cw = sg * cgp

    # the single extra HBM copy of x: replication-pad H, flatten (Hp, W)
    x_flat = jnp.pad(x_work, ((0, 0), (0, 0), (PR, PR), (0, 0)),
                     mode="edge").reshape(b, cw, n_flat)

    # precomputed mask bank: 9 conv zero-pad masks, 2*PW+1 pool row masks,
    # PW left + PW right edge-replication masks, all lane-dense (rows, HW).
    n = jnp.arange(hw, dtype=jnp.int32)
    ii, jj = n // w, n % w
    rows = []
    for t in range(9):
        di, dj = t // 3 - 1, t % 3 - 1
        rows.append((ii + di >= 0) & (ii + di <= h - 1)
                    & (jj + dj >= 0) & (jj + dj <= w - 1))
    for dj in range(-PW, PW + 1):
        rows.append((jj + dj >= 0) & (jj + dj <= w - 1))
    for t in range(PW):
        rows.append(jj == t)
    for t in range(PW):
        rows.append(jj == w - 1 - t)
    masks = jnp.stack(rows, axis=0).astype(jnp.float32)          # (NM, hw)

    # conv weights lane-dense per group: (sg, L, 9*cgp); biases flat in SMEM
    w_all = jnp.stack(
        [wg.astype(jnp.float32).transpose(0, 2, 3, 1).reshape(sg, 9 * cgp)
         for wg in weights], axis=1)                              # (sg, L, 9cgp)
    b_all = jnp.concatenate([bb.astype(jnp.float32) for bb in biases], axis=0)

    kern = functools.partial(_freq_sel_kernel, k_list=tuple(k_list), sg=sg,
                             cg=cgp, H=h, W=w, PR=PR, PW=PW)

    out_shape = tuple(jax.ShapeDtypeStruct((b, cw, hw), x.dtype)
                      for _ in range(L + 1))
    out_specs = tuple(pl.BlockSpec((1, cgp, hw), lambda i, g: (i, g, 0))
                      for _ in range(L + 1))

    pk_sum = sum(k // 2 for k in k_list)
    flops_step = hw * cgp * (2 * 9 * L + 9 + 4 * pk_sum + 6 * L)
    cost = pl.CostEstimate(
        flops=int(flops_step * b * sg),
        transcendentals=int(b * sg * L * hw),
        bytes_accessed=int(x_flat.size * x_flat.dtype.itemsize
                           + masks.size * 4 + w_all.size * 4 + b_all.size * 4
                           + (L + 1) * b * cw * hw * x.dtype.itemsize))

    outs = pl.pallas_call(
        kern,
        out_shape=out_shape,
        grid=(b, sg),
        in_specs=[
            pl.BlockSpec((1, cgp, n_flat), lambda i, g: (i, g, 0)),
            pl.BlockSpec((masks.shape[0], hw), lambda i, g: (0, 0)),
            pl.BlockSpec((1, L, 9 * cgp), lambda i, g: (g, 0, 0)),
            pl.BlockSpec(memory_space=pltpu.MemorySpace.SMEM),
        ],
        out_specs=out_specs,
        compiler_params=pltpu.CompilerParams(
            dimension_semantics=("parallel", "parallel")),
        cost_estimate=cost,
    )(x_flat, masks, w_all, b_all)

    # contiguous reshape back to NCHW (extra slice only if channels were padded)
    outs = [o.reshape(b, sg, cgp, h, w) for o in outs]
    if cgp != cg:
        outs = [o[:, :, :cg] for o in outs]
    return [o.reshape(b, c, h, w) for o in outs]


def _reference_forward(x, weights, biases, k_list, spatial_group=1):
    """Pure-JAX reference mirroring the PyTorch module (for verification)."""
    b, c, h, w = x.shape
    sg = spatial_group
    outs = []
    pre = x
    for k, wgt, bias in zip(k_list, weights, biases):
        pk = k // 2
        xp = jnp.pad(x, ((0, 0), (0, 0), (pk, pk), (pk, pk)), mode="edge")
        low = lax.reduce_window(xp, 0.0, lax.add, (1, 1, k, k),
                                (1, 1, 1, 1), "VALID") / float(k * k)
        high = pre - low
        fw = lax.conv_general_dilated(
            x, wgt, window_strides=(1, 1), padding="SAME",
            dimension_numbers=("NCHW", "OIHW", "NCHW"),
            feature_group_count=sg, precision=lax.Precision.HIGHEST,
        ) + bias[None, :, None, None]
        fw = jax.nn.sigmoid(fw) * 2.0
        outs.append((fw.reshape(b, sg, 1, h, w) *
                     high.reshape(b, sg, -1, h, w)).reshape(b, -1, h, w))
        pre = low
    outs.append(pre)
    return outs


def _check(key, B, C, H, W, k_list, sg):
    eff_sg = C if sg > 64 else sg
    cg = C // eff_sg
    key, kx = jax.random.split(key)
    x = jax.random.normal(kx, (B, C, H, W), jnp.float32)

    # Deterministic Conv2d-style init: uniform(-1/sqrt(fan_in), 1/sqrt(fan_in))
    weights, biases = [], []
    for _ in k_list:
        key, kw, kb = jax.random.split(key, 3)
        bound = 1.0 / (cg * 9) ** 0.5
        weights.append(jax.random.uniform(kw, (eff_sg, cg, 3, 3), jnp.float32,
                                          -bound, bound))
        biases.append(jax.random.uniform(kb, (eff_sg,), jnp.float32,
                                         -bound, bound))

    outs = frequency_selection_forward(x, weights, biases, k_list, sg)
    outs = [jax.block_until_ready(o) for o in outs]

    refs = _reference_forward(x, weights, biases, k_list, eff_sg)
    assert len(outs) == len(refs) == len(k_list) + 1
    for o, r in zip(outs, refs):
        assert o.shape == r.shape, (o.shape, r.shape)
        err = float(jnp.abs(o - r).max())
        assert jnp.allclose(o, r, rtol=1e-3, atol=1e-3), err
    return key


if __name__ == "__main__":
    key = jax.random.PRNGKey(0)
    # cg = 8: full f32 vreg sublanes, no channel padding needed
    key = _check(key, B=2, C=8, H=16, W=16, k_list=[3, 5], sg=1)
    # grouped conv (sg=2) with cg=2 -> padded to 8 sublanes inside the wrapper
    key = _check(key, B=2, C=4, H=16, W=16, k_list=[3], sg=2)
    print("KERNEL_OK")
</pallas_src>

<mosaic_0001>
module attributes {stable_mosaic.version = 11 : i64} {
  func.func @_freq_sel_kernel(%arg0: i32, %arg1: i32, %arg2: memref<1x8x352xf32, #tpu.memory_space<vmem>>, %arg3: memref<18x256xf32, #tpu.memory_space<vmem>>, %arg4: memref<1x2x72xf32, #tpu.memory_space<vmem>>, %arg5: memref<2xf32, #tpu.memory_space<smem>>, %arg6: memref<1x8x256xf32, #tpu.memory_space<vmem>>, %arg7: memref<1x8x256xf32, #tpu.memory_space<vmem>>, %arg8: memref<1x8x256xf32, #tpu.memory_space<vmem>>) attributes {dimension_semantics = [#tpu.dimension_semantics<parallel>, #tpu.dimension_semantics<parallel>], iteration_bounds = array<i64: 2, 1>, scalar_prefetch = 0 : i64, scratch_operands = 0 : i64, tpu.core_type = #tpu.core_type<tc>, window_params = [{transform_indices = @transform_0, window_bounds = array<i64: 1, 8, 352>}, {pipeline_mode = #tpu.pipeline_mode<synchronous>, transform_indices = @transform_1, window_bounds = array<i64: 18, 256>}, {transform_indices = @transform_2, window_bounds = array<i64: 1, 2, 72>}, {transform_indices = @transform_3, window_bounds = array<i64: 2>}, {transform_indices = @transform_4, window_bounds = array<i64: 1, 8, 256>}, {transform_indices = @transform_5, window_bounds = array<i64: 1, 8, 256>}, {transform_indices = @transform_6, window_bounds = array<i64: 1, 8, 256>}]} {
    %c0 = arith.constant 0 : index
    %c0_0 = arith.constant 0 : index
    %c0_1 = arith.constant 0 : index
    %0 = vector.load %arg2[%c0, %c0_0, %c0_1] : memref<1x8x352xf32, #tpu.memory_space<vmem>>, vector<1x8x352xf32>
    %1 = vector.shape_cast %0 : vector<1x8x352xf32> to vector<8x352xf32>
    %2 = vector.extract_strided_slice %1 {offsets = [0, 31], sizes = [8, 256], strides = [1, 1]} : vector<8x352xf32> to vector<8x256xf32>
    %c0_2 = arith.constant 0 : index
    %c0_3 = arith.constant 0 : index
    %3 = vector.load %arg3[%c0_2, %c0_3] : memref<18x256xf32, #tpu.memory_space<vmem>>, vector<1x256xf32>
    %4 = vector.broadcast %3 : vector<1x256xf32> to vector<8x256xf32>
    %5 = arith.mulf %2, %4 : vector<8x256xf32>
    %6 = vector.extract_strided_slice %1 {offsets = [0, 32], sizes = [8, 256], strides = [1, 1]} : vector<8x352xf32> to vector<8x256xf32>
    %c1 = arith.constant 1 : index
    %c0_4 = arith.constant 0 : index
    %7 = vector.load %arg3[%c1, %c0_4] : memref<18x256xf32, #tpu.memory_space<vmem>>, vector<1x256xf32>
    %8 = vector.broadcast %7 : vector<1x256xf32> to vector<8x256xf32>
    %9 = arith.mulf %6, %8 : vector<8x256xf32>
    %10 = vector.extract_strided_slice %1 {offsets = [0, 33], sizes = [8, 256], strides = [1, 1]} : vector<8x352xf32> to vector<8x256xf32>
    %c2 = arith.constant 2 : index
    %c0_5 = arith.constant 0 : index
    %11 = vector.load %arg3[%c2, %c0_5] : memref<18x256xf32, #tpu.memory_space<vmem>>, vector<1x256xf32>
    %12 = vector.broadcast %11 : vector<1x256xf32> to vector<8x256xf32>
    %13 = arith.mulf %10, %12 : vector<8x256xf32>
    %14 = vector.extract_strided_slice %1 {offsets = [0, 47], sizes = [8, 256], strides = [1, 1]} : vector<8x352xf32> to vector<8x256xf32>
    %c3 = arith.constant 3 : index
    %c0_6 = arith.constant 0 : index
    %15 = vector.load %arg3[%c3, %c0_6] : memref<18x256xf32, #tpu.memory_space<vmem>>, vector<1x256xf32>
    %16 = vector.broadcast %15 : vector<1x256xf32> to vector<8x256xf32>
    %17 = arith.mulf %14, %16 : vector<8x256xf32>
    %18 = vector.extract_strided_slice %1 {offsets = [0, 48], sizes = [8, 256], strides = [1, 1]} : vector<8x352xf32> to vector<8x256xf32>
    %c4 = arith.constant 4 : index
    %c0_7 = arith.constant 0 : index
    %19 = vector.load %arg3[%c4, %c0_7] : memref<18x256xf32, #tpu.memory_space<vmem>>, vector<1x256xf32>
    %20 = vector.broadcast %19 : vector<1x256xf32> to vector<8x256xf32>
    %21 = arith.mulf %18, %20 : vector<8x256xf32>
    %22 = vector.extract_strided_slice %1 {offsets = [0, 49], sizes = [8, 256], strides = [1, 1]} : vector<8x352xf32> to vector<8x256xf32>
    %c5 = arith.constant 5 : index
    %c0_8 = arith.constant 0 : index
    %23 = vector.load %arg3[%c5, %c0_8] : memref<18x256xf32, #tpu.memory_space<vmem>>, vector<1x256xf32>
    %24 = vector.broadcast %23 : vector<1x256xf32> to vector<8x256xf32>
    %25 = arith.mulf %22, %24 : vector<8x256xf32>
    %26 = vector.extract_strided_slice %1 {offsets = [0, 63], sizes = [8, 256], strides = [1, 1]} : vector<8x352xf32> to vector<8x256xf32>
    %c6 = arith.constant 6 : index
    %c0_9 = arith.constant 0 : index
    %27 = vector.load %arg3[%c6, %c0_9] : memref<18x256xf32, #tpu.memory_space<vmem>>, vector<1x256xf32>
    %28 = vector.broadcast %27 : vector<1x256xf32> to vector<8x256xf32>
    %29 = arith.mulf %26, %28 : vector<8x256xf32>
    %30 = vector.extract_strided_slice %1 {offsets = [0, 64], sizes = [8, 256], strides = [1, 1]} : vector<8x352xf32> to vector<8x256xf32>
    %c7 = arith.constant 7 : index
    %c0_10 = arith.constant 0 : index
    %31 = vector.load %arg3[%c7, %c0_10] : memref<18x256xf32, #tpu.memory_space<vmem>>, vector<1x256xf32>
    %32 = vector.broadcast %31 : vector<1x256xf32> to vector<8x256xf32>
    %33 = arith.mulf %30, %32 : vector<8x256xf32>
    %34 = vector.extract_strided_slice %1 {offsets = [0, 65], sizes = [8, 256], strides = [1, 1]} : vector<8x352xf32> to vector<8x256xf32>
    %c8 = arith.constant 8 : index
    %c0_11 = arith.constant 0 : index
    %35 = vector.load %arg3[%c8, %c0_11] : memref<18x256xf32, #tpu.memory_space<vmem>>, vector<1x256xf32>
    %36 = vector.broadcast %35 : vector<1x256xf32> to vector<8x256xf32>
    %37 = arith.mulf %34, %36 : vector<8x256xf32>
    %38 = tpu.concatenate %5, %9, %13, %17, %21, %25, %29, %33, %37 in 0 : vector<8x256xf32>, vector<8x256xf32>, vector<8x256xf32>, vector<8x256xf32>, vector<8x256xf32>, vector<8x256xf32>, vector<8x256xf32>, vector<8x256xf32>, vector<8x256xf32> -> vector<72x256xf32>
    %c0_12 = arith.constant 0 : index
    %c0_13 = arith.constant 0 : index
    %c0_14 = arith.constant 0 : index
    %39 = vector.load %arg4[%c0_12, %c0_13, %c0_14] : memref<1x2x72xf32, #tpu.memory_space<vmem>>, vector<1x2x72xf32>
    %40 = vector.shape_cast %39 : vector<1x2x72xf32> to vector<2x72xf32>
    %cst = arith.constant dense<0.000000e+00> : vector<2x256xf32>
    %41 = tpu.matmul %40, %38, %cst {dimension_numbers = #tpu.dot_dimension_numbers<[1], [0], [0], [1], [0, 0, 1, 1], [], []>} : vector<2x72xf32>, vector<72x256xf32>, vector<2x256xf32> -> vector<2x256xf32>
    %42 = vector.extract_strided_slice %41 {offsets = [0, 0], sizes = [1, 256], strides = [1, 1]} : vector<2x256xf32> to vector<1x256xf32>
    %c0_i32 = arith.constant 0 : i32
    %43 = arith.addi %c0_i32, %arg1 : i32
    %44 = arith.index_cast %43 : i32 to index
    %45 = memref.load %arg5[%44] : memref<2xf32, #tpu.memory_space<smem>>
    %46 = vector.broadcast %45 : f32 to vector<1x256xf32>
    %47 = arith.addf %42, %46 : vector<1x256xf32>
    %48 = arith.negf %47 : vector<1x256xf32>
    %49 = math.exp %48 : vector<1x256xf32>
    %cst_15 = arith.constant 1.000000e+00 : f32
    %50 = vector.broadcast %cst_15 : f32 to vector<1x256xf32>
    %51 = arith.addf %50, %49 : vector<1x256xf32>
    %52 = arith.divf %50, %51 : vector<1x256xf32>
    %cst_16 = arith.constant 2.000000e+00 : f32
    %53 = vector.broadcast %cst_16 : f32 to vector<1x256xf32>
    %54 = arith.mulf %52, %53 : vector<1x256xf32>
    %55 = vector.extract_strided_slice %41 {offsets = [1, 0], sizes = [1, 256], strides = [1, 1]} : vector<2x256xf32> to vector<1x256xf32>
    %c1_i32 = arith.constant 1 : i32
    %56 = arith.addi %c1_i32, %arg1 : i32
    %57 = arith.index_cast %56 : i32 to index
    %58 = memref.load %arg5[%57] : memref<2xf32, #tpu.memory_space<smem>>
    %59 = vector.broadcast %58 : f32 to vector<1x256xf32>
    %60 = arith.addf %55, %59 : vector<1x256xf32>
    %61 = arith.negf %60 : vector<1x256xf32>
    %62 = math.exp %61 : vector<1x256xf32>
    %cst_17 = arith.constant 1.000000e+00 : f32
    %63 = vector.broadcast %cst_17 : f32 to vector<1x256xf32>
    %64 = arith.addf %63, %62 : vector<1x256xf32>
    %65 = arith.divf %63, %64 : vector<1x256xf32>
    %cst_18 = arith.constant 2.000000e+00 : f32
    %66 = vector.broadcast %cst_18 : f32 to vector<1x256xf32>
    %67 = arith.mulf %65, %66 : vector<1x256xf32>
    %68 = vector.extract_strided_slice %1 {offsets = [0, 48], sizes = [8, 256], strides = [1, 1]} : vector<8x352xf32> to vector<8x256xf32>
    %69 = vector.extract_strided_slice %1 {offsets = [0, 30], sizes = [8, 260], strides = [1, 1]} : vector<8x352xf32> to vector<8x260xf32>
    %70 = vector.extract_strided_slice %1 {offsets = [0, 46], sizes = [8, 260], strides = [1, 1]} : vector<8x352xf32> to vector<8x260xf32>
    %71 = arith.addf %69, %70 : vector<8x260xf32>
    %72 = vector.extract_strided_slice %1 {offsets = [0, 62], sizes = [8, 260], strides = [1, 1]} : vector<8x352xf32> to vector<8x260xf32>
    %73 = arith.addf %71, %72 : vector<8x260xf32>
    %74 = vector.extract_strided_slice %73 {offsets = [0, 1], sizes = [8, 256], strides = [1, 1]} : vector<8x260xf32> to vector<8x256xf32>
    %75 = vector.extract_strided_slice %73 {offsets = [0, 2], sizes = [8, 256], strides = [1, 1]} : vector<8x260xf32> to vector<8x256xf32>
    %76 = vector.extract_strided_slice %73 {offsets = [0, 3], sizes = [8, 256], strides = [1, 1]} : vector<8x260xf32> to vector<8x256xf32>
    %c12 = arith.constant 12 : index
    %c0_19 = arith.constant 0 : index
    %77 = vector.load %arg3[%c12, %c0_19] : memref<18x256xf32, #tpu.memory_space<vmem>>, vector<1x256xf32>
    %78 = vector.broadcast %77 : vector<1x256xf32> to vector<8x256xf32>
    %79 = arith.mulf %76, %78 : vector<8x256xf32>
    %80 = arith.addf %75, %79 : vector<8x256xf32>
    %c10 = arith.constant 10 : index
    %c0_20 = arith.constant 0 : index
    %81 = vector.load %arg3[%c10, %c0_20] : memref<18x256xf32, #tpu.memory_space<vmem>>, vector<1x256xf32>
    %82 = vector.broadcast %81 : vector<1x256xf32> to vector<8x256xf32>
    %83 = arith.mulf %74, %82 : vector<8x256xf32>
    %84 = arith.addf %80, %83 : vector<8x256xf32>
    %c14 = arith.constant 14 : index
    %c0_21 = arith.constant 0 : index
    %85 = vector.load %arg3[%c14, %c0_21] : memref<18x256xf32, #tpu.memory_space<vmem>>, vector<1x256xf32>
    %cst_22 = arith.constant 1.000000e+00 : f32
    %86 = vector.broadcast %cst_22 : f32 to vector<1x256xf32>
    %87 = arith.mulf %86, %85 : vector<1x256xf32>
    %88 = vector.broadcast %87 : vector<1x256xf32> to vector<8x256xf32>
    %89 = arith.mulf %88, %75 : vector<8x256xf32>
    %90 = arith.addf %84, %89 : vector<8x256xf32>
    %c16 = arith.constant 16 : index
    %c0_23 = arith.constant 0 : index
    %91 = vector.load %arg3[%c16, %c0_23] : memref<18x256xf32, #tpu.memory_space<vmem>>, vector<1x256xf32>
    %cst_24 = arith.constant 1.000000e+00 : f32
    %92 = vector.broadcast %cst_24 : f32 to vector<1x256xf32>
    %93 = arith.mulf %92, %91 : vector<1x256xf32>
    %94 = vector.broadcast %93 : vector<1x256xf32> to vector<8x256xf32>
    %95 = arith.mulf %94, %75 : vector<8x256xf32>
    %96 = arith.addf %90, %95 : vector<8x256xf32>
    %cst_25 = arith.constant 0.111111112 : f32
    %97 = vector.broadcast %cst_25 : f32 to vector<8x256xf32>
    %98 = arith.mulf %96, %97 : vector<8x256xf32>
    %99 = arith.subf %68, %98 : vector<8x256xf32>
    %100 = vector.broadcast %54 : vector<1x256xf32> to vector<8x256xf32>
    %101 = arith.mulf %100, %99 : vector<8x256xf32>
    %c0_26 = arith.constant 0 : index
    %c0_27 = arith.constant 0 : index
    %c0_28 = arith.constant 0 : index
    %102 = vector.load %arg6[%c0_26, %c0_27, %c0_28] : memref<1x8x256xf32, #tpu.memory_space<vmem>>, vector<1x8x256xf32>
    %103 = vector.shape_cast %102 : vector<1x8x256xf32> to vector<8x256xf32>
    %104 = vector.shape_cast %101 : vector<8x256xf32> to vector<1x8x256xf32>
    tpu.vector_store %arg6[%c0_26, %c0_27, %c0_28], %104 {strides = array<i32>} : memref<1x8x256xf32, #tpu.memory_space<vmem>>, vector<1x8x256xf32>,
    %105 = vector.extract_strided_slice %1 {offsets = [0, 14], sizes = [8, 260], strides = [1, 1]} : vector<8x352xf32> to vector<8x260xf32>
    %106 = vector.extract_strided_slice %1 {offsets = [0, 30], sizes = [8, 260], strides = [1, 1]} : vector<8x352xf32> to vector<8x260xf32>
    %107 = arith.addf %105, %106 : vector<8x260xf32>
    %108 = vector.extract_strided_slice %1 {offsets = [0, 46], sizes = [8, 260], strides = [1, 1]} : vector<8x352xf32> to vector<8x260xf32>
    %109 = arith.addf %107, %108 : vector<8x260xf32>
    %110 = vector.extract_strided_slice %1 {offsets = [0, 62], sizes = [8, 260], strides = [1, 1]} : vector<8x352xf32> to vector<8x260xf32>
    %111 = arith.addf %109, %110 : vector<8x260xf32>
    %112 = vector.extract_strided_slice %1 {offsets = [0, 78], sizes = [8, 260], strides = [1, 1]} : vector<8x352xf32> to vector<8x260xf32>
    %113 = arith.addf %111, %112 : vector<8x260xf32>
    %114 = vector.extract_strided_slice %113 {offsets = [0, 0], sizes = [8, 256], strides = [1, 1]} : vector<8x260xf32> to vector<8x256xf32>
    %115 = vector.extract_strided_slice %113 {offsets = [0, 1], sizes = [8, 256], strides = [1, 1]} : vector<8x260xf32> to vector<8x256xf32>
    %116 = vector.extract_strided_slice %113 {offsets = [0, 2], sizes = [8, 256], strides = [1, 1]} : vector<8x260xf32> to vector<8x256xf32>
    %117 = vector.extract_strided_slice %113 {offsets = [0, 3], sizes = [8, 256], strides = [1, 1]} : vector<8x260xf32> to vector<8x256xf32>
    %118 = vector.extract_strided_slice %113 {offsets = [0, 4], sizes = [8, 256], strides = [1, 1]} : vector<8x260xf32> to vector<8x256xf32>
    %c12_29 = arith.constant 12 : index
    %c0_30 = arith.constant 0 : index
    %119 = vector.load %arg3[%c12_29, %c0_30] : memref<18x256xf32, #tpu.memory_space<vmem>>, vector<1x256xf32>
    %120 = vector.broadcast %119 : vector<1x256xf32> to vector<8x256xf32>
    %121 = arith.mulf %117, %120 : vector<8x256xf32>
    %122 = arith.addf %116, %121 : vector<8x256xf32>
    %c10_31 = arith.constant 10 : index
    %c0_32 = arith.constant 0 : index
    %123 = vector.load %arg3[%c10_31, %c0_32] : memref<18x256xf32, #tpu.memory_space<vmem>>, vector<1x256xf32>
    %124 = vector.broadcast %123 : vector<1x256xf32> to vector<8x256xf32>
    %125 = arith.mulf %115, %124 : vector<8x256xf32>
    %126 = arith.addf %122, %125 : vector<8x256xf32>
    %c13 = arith.constant 13 : index
    %c0_33 = arith.constant 0 : index
    %127 = vector.load %arg3[%c13, %c0_33] : memref<18x256xf32, #tpu.memory_space<vmem>>, vector<1x256xf32>
    %128 = vector.broadcast %127 : vector<1x256xf32> to vector<8x256xf32>
    %129 = arith.mulf %118, %128 : vector<8x256xf32>
    %130 = arith.addf %126, %129 : vector<8x256xf32>
    %c9 = arith.constant 9 : index
    %c0_34 = arith.constant 0 : index
    %131 = vector.load %arg3[%c9, %c0_34] : memref<18x256xf32, #tpu.memory_space<vmem>>, vector<1x256xf32>
    %132 = vector.broadcast %131 : vector<1x256xf32> to vector<8x256xf32>
    %133 = arith.mulf %114, %132 : vector<8x256xf32>
    %134 = arith.addf %130, %133 : vector<8x256xf32>
    %c14_35 = arith.constant 14 : index
    %c0_36 = arith.constant 0 : index
    %135 = vector.load %arg3[%c14_35, %c0_36] : memref<18x256xf32, #tpu.memory_space<vmem>>, vector<1x256xf32>
    %cst_37 = arith.constant 2.000000e+00 : f32
    %136 = vector.broadcast %cst_37 : f32 to vector<1x256xf32>
    %137 = arith.mulf %136, %135 : vector<1x256xf32>
    %138 = vector.broadcast %137 : vector<1x256xf32> to vector<8x256xf32>
    %139 = arith.mulf %138, %116 : vector<8x256xf32>
    %140 = arith.addf %134, %139 : vector<8x256xf32>
    %c16_38 = arith.constant 16 : index
    %c0_39 = arith.constant 0 : index
    %141 = vector.load %arg3[%c16_38, %c0_39] : memref<18x256xf32, #tpu.memory_space<vmem>>, vector<1x256xf32>
    %cst_40 = arith.constant 2.000000e+00 : f32
    %142 = vector.broadcast %cst_40 : f32 to vector<1x256xf32>
    %143 = arith.mulf %142, %141 : vector<1x256xf32>
    %144 = vector.broadcast %143 : vector<1x256xf32> to vector<8x256xf32>
    %145 = arith.mulf %144, %116 : vector<8x256xf32>
    %146 = arith.addf %140, %145 : vector<8x256xf32>
    %c15 = arith.constant 15 : index
    %c0_41 = arith.constant 0 : index
    %147 = vector.load %arg3[%c15, %c0_41] : memref<18x256xf32, #tpu.memory_space<vmem>>, vector<1x256xf32>
    %cst_42 = arith.constant 1.000000e+00 : f32
    %148 = vector.broadcast %cst_42 : f32 to vector<1x256xf32>
    %149 = arith.mulf %148, %147 : vector<1x256xf32>
    %150 = vector.broadcast %149 : vector<1x256xf32> to vector<8x256xf32>
    %151 = arith.mulf %150, %115 : vector<8x256xf32>
    %152 = arith.addf %146, %151 : vector<8x256xf32>
    %c17 = arith.constant 17 : index
    %c0_43 = arith.constant 0 : index
    %153 = vector.load %arg3[%c17, %c0_43] : memref<18x256xf32, #tpu.memory_space<vmem>>, vector<1x256xf32>
    %cst_44 = arith.constant 1.000000e+00 : f32
    %154 = vector.broadcast %cst_44 : f32 to vector<1x256xf32>
    %155 = arith.mulf %154, %153 : vector<1x256xf32>
    %156 = vector.broadcast %155 : vector<1x256xf32> to vector<8x256xf32>
    %157 = arith.mulf %156, %117 : vector<8x256xf32>
    %158 = arith.addf %152, %157 : vector<8x256xf32>
    %cst_45 = arith.constant 4.000000e-02 : f32
    %159 = vector.broadcast %cst_45 : f32 to vector<8x256xf32>
    %160 = arith.mulf %158, %159 : vector<8x256xf32>
    %161 = arith.subf %98, %160 : vector<8x256xf32>
    %162 = vector.broadcast %67 : vector<1x256xf32> to vector<8x256xf32>
    %163 = arith.mulf %162, %161 : vector<8x256xf32>
    %c0_46 = arith.constant 0 : index
    %c0_47 = arith.constant 0 : index
    %c0_48 = arith.constant 0 : index
    %164 = vector.load %arg7[%c0_46, %c0_47, %c0_48] : memref<1x8x256xf32, #tpu.memory_space<vmem>>, vector<1x8x256xf32>
    %165 = vector.shape_cast %164 : vector<1x8x256xf32> to vector<8x256xf32>
    %166 = vector.shape_cast %163 : vector<8x256xf32> to vector<1x8x256xf32>
    tpu.vector_store %arg7[%c0_46, %c0_47, %c0_48], %166 {strides = array<i32>} : memref<1x8x256xf32, #tpu.memory_space<vmem>>, vector<1x8x256xf32>,
    %c0_49 = arith.constant 0 : index
    %c0_50 = arith.constant 0 : index
    %c0_51 = arith.constant 0 : index
    %167 = vector.load %arg8[%c0_49, %c0_50, %c0_51] : memref<1x8x256xf32, #tpu.memory_space<vmem>>, vector<1x8x256xf32>
    %168 = vector.shape_cast %167 : vector<1x8x256xf32> to vector<8x256xf32>
    %169 = vector.shape_cast %160 : vector<8x256xf32> to vector<1x8x256xf32>
    tpu.vector_store %arg8[%c0_49, %c0_50, %c0_51], %169 {strides = array<i32>} : memref<1x8x256xf32, #tpu.memory_space<vmem>>, vector<1x8x256xf32>,
    return
  }
  func.func @transform_0(%arg0: i32, %arg1: i32) -> (i32, i32, i32) {
    %c0_i32 = arith.constant 0 : i32
    %c0_i32_0 = arith.constant 0 : i32
    return %arg0, %arg1, %c0_i32 : i32, i32, i32
  }
  func.func @transform_1(%arg0: i32, %arg1: i32) -> (i32, i32) {
    %c0_i32 = arith.constant 0 : i32
    %c0_i32_0 = arith.constant 0 : i32
    %c0_i32_1 = arith.constant 0 : i32
    return %c0_i32, %c0_i32_0 : i32, i32
  }
  func.func @transform_2(%arg0: i32, %arg1: i32) -> (i32, i32, i32) {
    %c0_i32 = arith.constant 0 : i32
    %c0_i32_0 = arith.constant 0 : i32
    %c0_i32_1 = arith.constant 0 : i32
    return %arg1, %c0_i32, %c0_i32_0 : i32, i32, i32
  }
  func.func @transform_3(%arg0: i32, %arg1: i32) -> i32 {
    %c0_i32 = arith.constant 0 : i32
    %c0_i32_0 = arith.constant 0 : i32
    return %c0_i32 : i32
  }
  func.func @transform_4(%arg0: i32, %arg1: i32) -> (i32, i32, i32) {
    %c0_i32 = arith.constant 0 : i32
    %c0_i32_0 = arith.constant 0 : i32
    return %arg0, %arg1, %c0_i32 : i32, i32, i32
  }
  func.func @transform_5(%arg0: i32, %arg1: i32) -> (i32, i32, i32) {
    %c0_i32 = arith.constant 0 : i32
    %c0_i32_0 = arith.constant 0 : i32
    return %arg0, %arg1, %c0_i32 : i32, i32, i32
  }
  func.func @transform_6(%arg0: i32, %arg1: i32) -> (i32, i32, i32) {
    %c0_i32 = arith.constant 0 : i32
    %c0_i32_0 = arith.constant 0 : i32
    return %arg0, %arg1, %c0_i32 : i32, i32, i32
  }
}

</mosaic_0001>

<llo_original>
// kernel: tpu_custom_call.1
$region0: #{tpu_custom_call.1}
  #allocation0 [shape = 'u32[]', space=smem, size = 0x4, offset = 0x4, fixed_abs, tag = 'smem constant byte address 0x4 - core index']
  #allocation1 [shape = 'u32[144,128]{1,0:T(1,128)}', space=vmem, size = 0x12000, scoped, tag = 'internal scratch']
  %s0 = inlined_call_operand.hbm [shape: f32[2,8,352], index: 0, kind: input, shape index: {}]
  %s1 = inlined_call_operand.hbm [shape: f32[18,256], index: 1, kind: input, shape index: {}]
  %s2 = inlined_call_operand.vmem [shape: f32[1,2,72], index: 2, kind: input, shape index: {}]
  %s3 = inlined_call_operand.vmem [shape: f32[2], index: 3, kind: input, shape index: {}]
  %s4 = inlined_call_operand.hbm [shape: f32[2,8,256], index: 4, kind: output, shape index: {0}]
  %s5 = inlined_call_operand.hbm [shape: f32[2,8,256], index: 5, kind: output, shape index: {1}]
  %s6 = inlined_call_operand.hbm [shape: f32[2,8,256], index: 6, kind: output, shape index: {2}]
  %7 = xla_tuple %s4, %s5, %s6
  %s8 = sld [smem:[#allocation0]]
  $region77: #{tpu_custom_call.1} parent=0
    _
  %s10 = ssub.s32 1, %s8
  %s11 = scalar_select 0, %s10, %s8
  $region1: #{tpu_custom_call.1} parent=0
    #allocation2 [shape = 'u8[24576]{0}', space=vmem, size = 0x6000, scoped, tag = 'input window, operand 0']
    #allocation3 [shape = 's32[2]{0}', space=sflag, size = 0x8, scoped, tag = 'scoped memory for tpu_custom_call.1']
    #allocation4 [shape = 's32[2]{0}', space=sflag, size = 0x8, scoped, tag = 'scoped memory for tpu_custom_call.1']
    #allocation5 [shape = 's32[2]{0}', space=sflag, size = 0x8, scoped, tag = 'scoped memory for tpu_custom_call.1']
    #allocation6 [shape = 'u8[24576]{0}', space=vmem, size = 0x6000, scoped, tag = 'input window, operand 1, single buffered']
    #allocation7 [shape = 's32[1]{0}', space=sflag, size = 0x4, scoped, tag = 'scoped memory for tpu_custom_call.1']
    #allocation8 [shape = 'u8[512]{0}', space=smem, size = 0x200, scoped, tag = 'input window, operand 3, single buffered']
    #allocation9 [shape = 'u8[16384]{0}', space=vmem, size = 0x4000, scoped, tag = 'output window, operand 0']
    #allocation10 [shape = 'u8[16384]{0}', space=vmem, size = 0x4000, scoped, tag = 'output window, operand 1']
    #allocation11 [shape = 's32[2]{0}', space=sflag, size = 0x8, scoped, tag = 'scoped memory for tpu_custom_call.1']
    #allocation12 [shape = 'u8[16384]{0}', space=vmem, size = 0x4000, scoped, tag = 'output window, operand 2']
    %12 = vsyncpa [#allocation3], 0
    %s13 = scalar_lea.sflag [#allocation3], 1
    %14 = vsyncpa %s13, 0
    %15 = vsyncpa [#allocation7], 0
    %16 = vsyncpa [#allocation5], 0
    %17 = vsyncpa [#allocation4], 0
    %s18 = scalar_lea.sflag [#allocation4], 1
    %19 = vsyncpa %s18, 0
    %20 = vsyncpa [#allocation11], 0
    %s21 = scalar_lea.sflag [#allocation11], 1
    %22 = vsyncpa %s21, 0
    loop: start=0, step=1, limit=4
    $region2: #{tpu_custom_call.1} parent=1 // loop_pre_header
      _
    $region3: #{tpu_custom_call.1} parent=1 // loop_header
      %s24 = sphi 0, %s28
      %p25 = scmp.ge.s32.totalorder %s24, 4
      %s31 = sphi 0, %s43
      %s32 = sphi 0, %s39
      %s33 = sphi 0, %s31
      %s34 = sphi 0, %s32
      %s35 = sphi 0, %s33
      %s36 = sphi 0, %s34
      %s48 = sphi 0, %s50
      %s51 = sphi 0, %s48
      %s52 = sphi 0, %s51
      %s68 = sphi 0, %s52
      %s72 = sphi 0, %s72
      %s74 = sphi 0, %s72
      %s75 = sphi 0, %s74
      %s89 = sphi 0, %s75
      %s95 = sphi 0, %s97
      %s98 = sphi 0, %s95
      %s99 = sphi 0, %s98
      %s115 = sphi 0, %s99
      %s119 = sphi 0, %s119
      %s121 = sphi 0, %s119
      %s122 = sphi 0, %s121
      %s136 = sphi 0, %s122
      %s144 = sphi 0, %s146
      %s147 = sphi 0, %s144
      %s148 = sphi 0, %s147
      %s164 = sphi 0, %s148
      %s172 = sphi 0, %s174
      %s175 = sphi 0, %s172
      %s176 = sphi 0, %s175
      %s192 = sphi 0, %s176
      %s200 = sphi 0, %s202
      %s203 = sphi 0, %s200
      %s204 = sphi 0, %s203
      %s220 = sphi 0, %s204
    $region4: #{tpu_custom_call.1} parent=1 // loop_header_branch
      %27 = sbr.rel (%p25) target = $region8
    $region5: #{tpu_custom_call.1} parent=1 // loop_body
      %s29 = ssub.s32 %s24, 1
      %s30 = ssub.s32 %s24, 2
      %s37 = sadd.s32 1, %s32
      %p38 = scmp.ge.s32.totalorder %s37, 1
      %s39 = scalar_select %p38, 0, %s37
      %s40 = sadd.s32 1, %s31
      %s41 = scalar_select %p38, %s40, %s31
      %p42 = scmp.ge.s32.totalorder %s41, 2
      %s43 = scalar_select %p42, 0, %s41
      %s44 = ssub.s32 %s31, %s43
      %s45 = ssub.s32 %s32, %s39
      %s46 = sor.u32 %s44, %s45
      %p47 = scmp.eq.s32.totalorder %s46, 0
      %s49 = sadd.s32 %s48, 1
      %s50 = scalar_select %p47, %s48, %s49
      %p53 = pneg %p47
      %p54 = scmp.eq.s32.totalorder %s24, 1
      %p55 = por %p53, %p54
      %p56 = scmp.ne.s32.totalorder %s48, %s51
      %p57 = scmp.eq.s32.totalorder %s24, 0
      %p58 = por %p56, %p57
      %p59 = scmp.ne.s32.totalorder %s48, %s51
      %p60 = scmp.eq.s32.totalorder %s29, 1
      %p61 = por %p59, %p60
      %p62 = scmp.ne.s32.totalorder %s51, %s52
      %p63 = scmp.eq.s32.totalorder %s29, 0
      %p64 = por %p62, %p63
      %p65 = scmp.ne.s32.totalorder %s51, %s52
      %p66 = scmp.eq.s32.totalorder %s30, 1
      %p67 = por %p65, %p66
      %p69 = scmp.ne.s32.totalorder %s52, %s68
      %p70 = scmp.eq.s32.totalorder %s30, 0
      %p71 = por %p69, %p70
      %s73 = sadd.s32 %s72, 1
      %p76 = scmp.eq.s32.totalorder %s24, 1
      %p77 = scmp.ne.s32.totalorder %s72, %s74
      %p78 = scmp.eq.s32.totalorder %s24, 0
      %p79 = por %p77, %p78
      %p80 = scmp.ne.s32.totalorder %s72, %s74
      %p81 = scmp.eq.s32.totalorder %s29, 1
      %p82 = por %p80, %p81
      %p83 = scmp.ne.s32.totalorder %s74, %s75
      %p84 = scmp.eq.s32.totalorder %s29, 0
      %p85 = por %p83, %p84
      %p86 = scmp.ne.s32.totalorder %s74, %s75
      %p87 = scmp.eq.s32.totalorder %s30, 1
      %p88 = por %p86, %p87
      %p90 = scmp.ne.s32.totalorder %s75, %s89
      %p91 = scmp.eq.s32.totalorder %s30, 0
      %p92 = por %p90, %p91
      %s93 = ssub.s32 %s32, %s39
      %p94 = scmp.eq.s32.totalorder %s93, 0
      %s96 = sadd.s32 %s95, 1
      %s97 = scalar_select %p94, %s95, %s96
      %p100 = pneg %p94
      %p101 = scmp.eq.s32.totalorder %s24, 1
      %p102 = por %p100, %p101
      %p103 = scmp.ne.s32.totalorder %s95, %s98
      %p104 = scmp.eq.s32.totalorder %s24, 0
      %p105 = por %p103, %p104
      %p106 = scmp.ne.s32.totalorder %s95, %s98
      %p107 = scmp.eq.s32.totalorder %s29, 1
      %p108 = por %p106, %p107
      %p109 = scmp.ne.s32.totalorder %s98, %s99
      %p110 = scmp.eq.s32.totalorder %s29, 0
      %p111 = por %p109, %p110
      %p112 = scmp.ne.s32.totalorder %s98, %s99
      %p113 = scmp.eq.s32.totalorder %s30, 1
      %p114 = por %p112, %p113
      %p116 = scmp.ne.s32.totalorder %s99, %s115
      %p117 = scmp.eq.s32.totalorder %s30, 0
      %p118 = por %p116, %p117
      %s120 = sadd.s32 %s119, 1
      %p123 = scmp.eq.s32.totalorder %s24, 1
      %p124 = scmp.ne.s32.totalorder %s119, %s121
      %p125 = scmp.eq.s32.totalorder %s24, 0
      %p126 = por %p124, %p125
      %p127 = scmp.ne.s32.totalorder %s119, %s121
      %p128 = scmp.eq.s32.totalorder %s29, 1
      %p129 = por %p127, %p128
      %p130 = scmp.ne.s32.totalorder %s121, %s122
      %p131 = scmp.eq.s32.totalorder %s29, 0
      %p132 = por %p130, %p131
      %p133 = scmp.ne.s32.totalorder %s121, %s122
      %p134 = scmp.eq.s32.totalorder %s30, 1
      %p135 = por %p133, %p134
      %p137 = scmp.ne.s32.totalorder %s122, %s136
      %p138 = scmp.eq.s32.totalorder %s30, 0
      %p139 = por %p137, %p138
      %s140 = ssub.s32 %s31, %s43
      %s141 = ssub.s32 %s32, %s39
      %s142 = sor.u32 %s140, %s141
      %p143 = scmp.eq.s32.totalorder %s142, 0
      %s145 = sadd.s32 %s144, 1
      %s146 = scalar_select %p143, %s144, %s145
      %p149 = pneg %p143
      %p150 = scmp.eq.s32.totalorder %s24, 1
      %p151 = por %p149, %p150
      %p152 = scmp.ne.s32.totalorder %s144, %s147
      %p153 = scmp.eq.s32.totalorder %s24, 0
      %p154 = por %p152, %p153
      %p155 = scmp.ne.s32.totalorder %s144, %s147
      %p156 = scmp.eq.s32.totalorder %s29, 1
      %p157 = por %p155, %p156
      %p158 = scmp.ne.s32.totalorder %s147, %s148
      %p159 = scmp.eq.s32.totalorder %s29, 0
      %p160 = por %p158, %p159
      %p161 = scmp.ne.s32.totalorder %s147, %s148
      %p162 = scmp.eq.s32.totalorder %s30, 1
      %p163 = por %p161, %p162
      %p165 = scmp.ne.s32.totalorder %s148, %s164
      %p166 = scmp.eq.s32.totalorder %s30, 0
      %p167 = por %p165, %p166
      %s168 = ssub.s32 %s31, %s43
      %s169 = ssub.s32 %s32, %s39
      %s170 = sor.u32 %s168, %s169
      %p171 = scmp.eq.s32.totalorder %s170, 0
      %s173 = sadd.s32 %s172, 1
      %s174 = scalar_select %p171, %s172, %s173
      %p177 = pneg %p171
      %p178 = scmp.eq.s32.totalorder %s24, 1
      %p179 = por %p177, %p178
      %p180 = scmp.ne.s32.totalorder %s172, %s175
      %p181 = scmp.eq.s32.totalorder %s24, 0
      %p182 = por %p180, %p181
      %p183 = scmp.ne.s32.totalorder %s172, %s175
      %p184 = scmp.eq.s32.totalorder %s29, 1
      %p185 = por %p183, %p184
      %p186 = scmp.ne.s32.totalorder %s175, %s176
      %p187 = scmp.eq.s32.totalorder %s29, 0
      %p188 = por %p186, %p187
      %p189 = scmp.ne.s32.totalorder %s175, %s176
      %p190 = scmp.eq.s32.totalorder %s30, 1
      %p191 = por %p189, %p190
      %p193 = scmp.ne.s32.totalorder %s176, %s192
      %p194 = scmp.eq.s32.totalorder %s30, 0
      %p195 = por %p193, %p194
      %s196 = ssub.s32 %s31, %s43
      %s197 = ssub.s32 %s32, %s39
      %s198 = sor.u32 %s196, %s197
      %p199 = scmp.eq.s32.totalorder %s198, 0
      %s201 = sadd.s32 %s200, 1
      %s202 = scalar_select %p199, %s200, %s201
      %p205 = pneg %p199
      %p206 = scmp.eq.s32.totalorder %s24, 1
      %p207 = por %p205, %p206
      %p208 = scmp.ne.s32.totalorder %s200, %s203
      %p209 = scmp.eq.s32.totalorder %s24, 0
      %p210 = por %p208, %p209
      %p211 = scmp.ne.s32.totalorder %s200, %s203
      %p212 = scmp.eq.s32.totalorder %s29, 1
      %p213 = por %p211, %p212
      %p214 = scmp.ne.s32.totalorder %s203, %s204
      %p215 = scmp.eq.s32.totalorder %s29, 0
      %p216 = por %p214, %p215
      %p217 = scmp.ne.s32.totalorder %s203, %s204
      %p218 = scmp.eq.s32.totalorder %s30, 1
      %p219 = por %p217, %p218
      %p221 = scmp.ne.s32.totalorder %s204, %s220
      %p222 = scmp.eq.s32.totalorder %s30, 0
      %p223 = por %p221, %p222
      %p224 = scmp.le.s32.totalorder 1, %s24
      %p225 = scmp.lt.s32.totalorder %s24, 3
      %p226 = pnand %p224, %p225
      %p227 = pneg %p226
      // Predicated region
      $region9: #{tpu_custom_call.1} parent=5 // pred_check
        _
      $region10: #{tpu_custom_call.1} parent=5 // pred_check_branch
        %229 = sbr.rel (%p226) target = $region12
      $region11: #{tpu_custom_call.1} parent=5 // pred_region
        %s230 = ssub.s32 %s24, 1
        // Predicated region
        $region13: #{tpu_custom_call.1} parent=11 // pred_check
          %p231 = pneg %p85
        $region14: #{tpu_custom_call.1} parent=11 // pred_check_branch
          %233 = sbr.rel (%p231) target = $region16
        $region15: #{tpu_custom_call.1} parent=11 // pred_region
          %s235 = ssub.s32 768, 768
          %236 = vsyncadd [#allocation7], %s235
          %s237 = sshll.u32 [#allocation6], 4
          %s238 = int_to_ptr.vmem [resolvable:$true] %s237
          %243 = dma.hbm_to_vmem [thread:$0]  %s1, 768, %s238, [#allocation7], 256, 256, 16
        $region16: #{tpu_custom_call.1} parent=11 // pred_fallthru
          _
        // Predicated region
        $region17: #{tpu_custom_call.1} parent=11 // pred_check
          %p244 = pneg %p111
        $region18: #{tpu_custom_call.1} parent=11 // pred_check_branch
          %246 = sbr.rel (%p244) target = $region20
        $region19: #{tpu_custom_call.1} parent=11 // pred_region
          %p247 = scmp.lt.s32.totalorder %s34, 0
          %s248 = scalar_select %p247, %s34, 0
          %s249 = smul.addr %s248, 2
          %s250 = scalar_lea.vmem %s2, %s249
        $region20: #{tpu_custom_call.1} parent=11 // pred_fallthru
          _
        // Predicated region
        $region21: #{tpu_custom_call.1} parent=11 // pred_check
          %p251 = pneg %p132
        $region22: #{tpu_custom_call.1} parent=11 // pred_check_branch
          %253 = sbr.rel (%p251) target = $region24
        $region23: #{tpu_custom_call.1} parent=11 // pred_region
          %s255 = ssub.s32 16, 16
          %256 = vsyncadd [#allocation5], %s255
          %s258 = sshll.u32 %s3, 4
          %s259 = int_to_ptr.vmem [resolvable:$true] %s258
          %261 = dma.vmem_to_smem %s259, 16, [#allocation8], [#allocation5]
        $region24: #{tpu_custom_call.1} parent=11 // pred_fallthru
          _
      $region12: #{tpu_custom_call.1} parent=5 // pred_fallthru
        _
      %p262 = scmp.lt.s32.totalorder %s24, 2
      // Predicated region
      $region25: #{tpu_custom_call.1} parent=5 // pred_check
        %p263 = pneg %p262
      $region26: #{tpu_custom_call.1} parent=5 // pred_check_branch
        %265 = sbr.rel (%p263) target = $region28
      $region27: #{tpu_custom_call.1} parent=5 // pred_region
        // Predicated region
        $region29: #{tpu_custom_call.1} parent=27 // pred_check
          %p266 = pneg %p58
        $region30: #{tpu_custom_call.1} parent=27 // pred_check_branch
          %268 = sbr.rel (%p266) target = $region32
        $region31: #{tpu_custom_call.1} parent=27 // pred_region
          %s269 = sand.u32 %s48, 1
          %s270 = scalar_lea.sflag [#allocation3], %s269
          %s271 = sand.u32 %s48, 1
          %s272 = smul.addr %s271, 24
          %s273 = scalar_lea.vmem [#allocation2], %s272
          %s275 = ssub.s32 384, 384
          %276 = vsyncadd %s270, %s275
          %s277 = smul.addr %s32, 3
          %s278 = smul.addr %s31, 3
          %s279 = sadd.s32 %s277, %s278
          %s280 = smul.addr %s279, 128
          %s281 = scalar_lea.hbm %s0, %s280
          %s283 = sshll.u32 %s273, 4
          %s284 = int_to_ptr.vmem [resolvable:$true] %s283
          %286 = dma.hbm_to_vmem [thread:$0]  %s281, 384, %s284, %s270
        $region32: #{tpu_custom_call.1} parent=27 // pred_fallthru
          _
      $region28: #{tpu_custom_call.1} parent=5 // pred_fallthru
        _
      %p287 = scmp.le.s32.totalorder 1, %s24
      %p288 = scmp.lt.s32.totalorder %s24, 3
      %p289 = pnand %p287, %p288
      %p290 = pneg %p289
      // Predicated region
      $region33: #{tpu_custom_call.1} parent=5 // pred_check
        _
      $region34: #{tpu_custom_call.1} parent=5 // pred_check_branch
        %292 = sbr.rel (%p289) target = $region36
      $region35: #{tpu_custom_call.1} parent=5 // pred_region
        %s293 = ssub.s32 %s24, 1
        %s294 = sand.u32 %s51, 1
        %s295 = scalar_lea.sflag [#allocation3], %s294
        %s296 = sand.u32 %s51, 1
        %s297 = smul.addr %s296, 24
        %s298 = scalar_lea.vmem [#allocation2], %s297
        // Predicated region
        $region37: #{tpu_custom_call.1} parent=35 // pred_check
          %p299 = pneg %p64
        $region38: #{tpu_custom_call.1} parent=35 // pred_check_branch
          %301 = sbr.rel (%p299) target = $region40
        $region39: #{tpu_custom_call.1} parent=35 // pred_region
          %302 = dma.done %s295, 384
        $region40: #{tpu_custom_call.1} parent=35 // pred_fallthru
          _
        // Predicated region
        $region41: #{tpu_custom_call.1} parent=35 // pred_check
          %p303 = pneg %p85
        $region42: #{tpu_custom_call.1} parent=35 // pred_check_branch
          %305 = sbr.rel (%p303) target = $region44
        $region43: #{tpu_custom_call.1} parent=35 // pred_region
          %306 = dma.done [#allocation7], 768
        $region44: #{tpu_custom_call.1} parent=35 // pred_fallthru
          _
        // Predicated region
        $region45: #{tpu_custom_call.1} parent=35 // pred_check
          %p307 = pneg %p132
        $region46: #{tpu_custom_call.1} parent=35 // pred_check_branch
          %309 = sbr.rel (%p307) target = $region48
        $region47: #{tpu_custom_call.1} parent=35 // pred_region
          %310 = dma.done [#allocation5], 16
        $region48: #{tpu_custom_call.1} parent=35 // pred_fallthru
          _
        %311 = sfence
        %s312 = sand.u32 %s51, 1
        %s313 = scalar_lea.sflag [#allocation3], %s312
        %s314 = sand.u32 %s51, 1
        %s315 = smul.addr %s314, 24
        %s316 = scalar_lea.vmem [#allocation2], %s315
        %p317 = pneg %p64
        %p318 = pneg %p61
        %p319 = pneg %p85
        %p320 = pneg %p82
        %p321 = scmp.lt.s32.totalorder %s34, 0
        %s322 = scalar_select %p321, %s34, 0
        %s323 = smul.addr %s322, 2
        %s324 = scalar_lea.vmem %s2, %s323
        %p325 = pneg %p111
        %p326 = pneg %p108
        %p327 = pneg %p132
        %p328 = pneg %p129
        %p329 = pneg %p160
        %p330 = pneg %p157
        %s331 = sand.u32 %s147, 1
        %s332 = scalar_lea.sflag [#allocation4], %s331
        %s333 = sand.u32 %s147, 1
        %s334 = smul.addr %s333, 16
        %s335 = scalar_lea.vmem [#allocation9], %s334
        %p336 = pneg %p188
        %p337 = pneg %p185
        %s338 = sand.u32 %s29, 1
        %s339 = scalar_lea.sflag [#allocation11], %s338
        %s340 = sand.u32 %s175, 1
        %s341 = smul.addr %s340, 16
        %s342 = scalar_lea.vmem [#allocation10], %s341
        %p343 = pneg %p216
        %p344 = pneg %p213
        %s345 = sand.u32 %s29, 1
        %s346 = scalar_lea.sflag [#allocation11], %s345
        %s347 = sand.u32 %s203, 1
        %s348 = smul.addr %s347, 16
        %s349 = scalar_lea.vmem [#allocation12], %s348
        %p350 = scmp.lt.s32.totalorder %s34, 0
        %s351 = scalar_select %p350, %s34, 0
        %s352 = smul.addr %s351, 2
        %s353 = scalar_lea.vmem %s2, %s352
        %v354 = vld [vmem:[%s298] sm:$0xff]
        %v355 = vld [vmem:[%s298 + $0x8] sm:$0xff]
        %v356 = vld [vmem:[%s298 + $0x10] sm:$0xff]
        %v357 = vld [vmem:[#allocation6] ss:$8 sm:$0x3]
        %v359 = vlaneseq
        %v360 = vshrl.u32 %v359, 7
        %v361 = vsub.s32 0, %v360
        %v362 = vrot.slane %v357, %v361
        %v363 = vlaneseq
        %v364 = vshrl.u32 %v363, 7
        %v365 = vsub.s32 1, %v364
        %v366 = vrot.slane %v357, %v365
        %367 = vrot.lane.b32.xlu0 %v362, 31
        %v368 = vpop.permute.xlu0 %367
        %369 = vrot.lane.b32.xlu0 %v366, 31
        %v370 = vpop.permute.xlu0 %369
        %vm371 = vcmask 252928
        %v372 = vsel %vm371, %v368, %v370
        %v376 = vmul.f32 %v354, %v368
        %v377 = vmul.f32 %v355, %v372
        %v378 = vmul.f32 %v356, %v370
        %s379 = scalar_lea.vmem [#allocation6], 1
        %v380 = vld [vmem:[%s379] ss:$8 sm:$0x3]
        %v382 = vlaneseq
        %v383 = vshrl.u32 %v382, 7
        %v384 = vsub.s32 0, %v383
        %v385 = vrot.slane %v380, %v384
        %v386 = vlaneseq
        %v387 = vshrl.u32 %v386, 7
        %v388 = vsub.s32 1, %v387
        %v389 = vrot.slane %v380, %v388
        %390 = vrot.lane.b32.xlu0 %v385, 32
        %v391 = vpop.permute.xlu0 %390
        %392 = vrot.lane.b32.xlu0 %v389, 32
        %v393 = vpop.permute.xlu0 %392
        %vm394 = vcmask 261120
        %v395 = vsel %vm394, %v391, %v393
        %v399 = vmul.f32 %v354, %v391
        %v400 = vmul.f32 %v355, %v395
        %v401 = vmul.f32 %v356, %v393
        %s402 = scalar_lea.vmem [#allocation6], 2
        %v403 = vld [vmem:[%s402] ss:$8 sm:$0x3]
        %v405 = vlaneseq
        %v406 = vshrl.u32 %v405, 7
        %v407 = vsub.s32 0, %v406
        %v408 = vrot.slane %v403, %v407
        %v409 = vlaneseq
        %v410 = vshrl.u32 %v409, 7
        %v411 = vsub.s32 1, %v410
        %v412 = vrot.slane %v403, %v411
        %413 = vrot.lane.b32.xlu0 %v408, 33
        %v414 = vpop.permute.xlu0 %413
        %415 = vrot.lane.b32.xlu0 %v412, 33
        %v416 = vpop.permute.xlu0 %415
        %vm417 = vcmask 269312
        %v418 = vsel %vm417, %v414, %v416
        %v422 = vmul.f32 %v354, %v414
        %v423 = vmul.f32 %v355, %v418
        %v424 = vmul.f32 %v356, %v416
        %s425 = scalar_lea.vmem [#allocation6], 3
        %v426 = vld [vmem:[%s425] ss:$8 sm:$0x3]
        %v428 = vlaneseq
        %v429 = vshrl.u32 %v428, 7
        %v430 = vsub.s32 0, %v429
        %v431 = vrot.slane %v426, %v430
        %v432 = vlaneseq
        %v433 = vshrl.u32 %v432, 7
        %v434 = vsub.s32 1, %v433
        %v435 = vrot.slane %v426, %v434
        %436 = vrot.lane.b32.xlu0 %v431, 47
        %v437 = vpop.permute.xlu0 %436
        %438 = vrot.lane.b32.xlu0 %v435, 47
        %v439 = vpop.permute.xlu0 %438
        %vm440 = vcmask 384000
        %v441 = vsel %vm440, %v437, %v439
        %v445 = vmul.f32 %v354, %v437
        %v446 = vmul.f32 %v355, %v441
        %v447 = vmul.f32 %v356, %v439
        %s448 = scalar_lea.vmem [#allocation6], 4
        %v449 = vld [vmem:[%s448] ss:$8 sm:$0x3]
        %v451 = vlaneseq
        %v452 = vshrl.u32 %v451, 7
        %v453 = vsub.s32 0, %v452
        %v454 = vrot.slane %v449, %v453
        %v455 = vlaneseq
        %v456 = vshrl.u32 %v455, 7
        %v457 = vsub.s32 1, %v456
        %v458 = vrot.slane %v449, %v457
        %459 = vrot.lane.b32.xlu0 %v454, 48
        %v460 = vpop.permute.xlu0 %459
        %461 = vrot.lane.b32.xlu0 %v458, 48
        %v462 = vpop.permute.xlu0 %461
        %vm463 = vcmask 392192
        %v464 = vsel %vm463, %v460, %v462
        %v468 = vmul.f32 %v354, %v460
        %v469 = vmul.f32 %v355, %v464
        %v470 = vmul.f32 %v356, %v462
        %s471 = scalar_lea.vmem [#allocation6], 5
        %v472 = vld [vmem:[%s471] ss:$8 sm:$0x3]
        %v474 = vlaneseq
        %v475 = vshrl.u32 %v474, 7
        %v476 = vsub.s32 0, %v475
        %v477 = vrot.slane %v472, %v476
        %v478 = vlaneseq
        %v479 = vshrl.u32 %v478, 7
        %v480 = vsub.s32 1, %v479
        %v481 = vrot.slane %v472, %v480
        %482 = vrot.lane.b32.xlu0 %v477, 49
        %v483 = vpop.permute.xlu0 %482
        %484 = vrot.lane.b32.xlu0 %v481, 49
        %v485 = vpop.permute.xlu0 %484
        %vm486 = vcmask 400384
        %v487 = vsel %vm486, %v483, %v485
        %v491 = vmul.f32 %v354, %v483
        %v492 = vmul.f32 %v355, %v487
        %v493 = vmul.f32 %v356, %v485
        %s494 = scalar_lea.vmem [#allocation6], 6
        %v495 = vld [vmem:[%s494] ss:$8 sm:$0x3]
        %v497 = vlaneseq
        %v498 = vshrl.u32 %v497, 7
        %v499 = vsub.s32 0, %v498
        %v500 = vrot.slane %v495, %v499
        %v501 = vlaneseq
        %v502 = vshrl.u32 %v501, 7
        %v503 = vsub.s32 1, %v502
        %v504 = vrot.slane %v495, %v503
        %505 = vrot.lane.b32.xlu0 %v500, 63
        %v506 = vpop.permute.xlu0 %505
        %507 = vrot.lane.b32.xlu0 %v504, 63
        %v508 = vpop.permute.xlu0 %507
        %vm509 = vcmask 515072
        %v510 = vsel %vm509, %v506, %v508
        %v514 = vmul.f32 %v354, %v506
        %v515 = vmul.f32 %v355, %v510
        %v516 = vmul.f32 %v356, %v508
        %s517 = scalar_lea.vmem [#allocation6], 7
        %v518 = vld [vmem:[%s517] ss:$8 sm:$0x3]
        %v520 = vlaneseq
        %v521 = vshrl.u32 %v520, 7
        %v522 = vsub.s32 0, %v521
        %v523 = vrot.slane %v518, %v522
        %v524 = vlaneseq
        %v525 = vshrl.u32 %v524, 7
        %v526 = vsub.s32 1, %v525
        %v527 = vrot.slane %v518, %v526
        %528 = vrot.lane.b32.xlu0 %v523, 64
        %v529 = vpop.permute.xlu0 %528
        %530 = vrot.lane.b32.xlu0 %v527, 64
        %v531 = vpop.permute.xlu0 %530
        %vm532 = vcmask 523264
        %v533 = vsel %vm532, %v529, %v531
        %v537 = vmul.f32 %v354, %v529
        %v538 = vmul.f32 %v355, %v533
        %v539 = vmul.f32 %v356, %v531
        %s540 = scalar_lea.vmem [#allocation6], 16
        %v541 = vld [vmem:[%s540] ss:$8 sm:$0x3]
        %v543 = vlaneseq
        %v544 = vshrl.u32 %v543, 7
        %v545 = vsub.s32 0, %v544
        %v546 = vrot.slane %v541, %v545
        %v547 = vlaneseq
        %v548 = vshrl.u32 %v547, 7
        %v549 = vsub.s32 1, %v548
        %v550 = vrot.slane %v541, %v549
        %551 = vrot.lane.b32.xlu0 %v546, 65
        %v552 = vpop.permute.xlu0 %551
        %553 = vrot.lane.b32.xlu0 %v550, 65
        %v554 = vpop.permute.xlu0 %553
        %vm555 = vcmask 531456
        %v556 = vsel %vm555, %v552, %v554
        %v560 = vmul.f32 %v354, %v552
        %v561 = vmul.f32 %v355, %v556
        %v562 = vmul.f32 %v356, %v554
        %566 = vrot.lane.b32.xlu0 %v399, 127
        %v567 = vpop.permute.xlu0 %566
        %568 = vrot.lane.b32.xlu0 %v400, 127
        %v569 = vpop.permute.xlu0 %568
        %570 = vrot.lane.b32.xlu0 %v401, 127
        %v571 = vpop.permute.xlu0 %570
        %vm572 = vcmask 1039360
        %v573 = vsel %vm572, %v567, %v569
        %v574 = vsel %vm572, %v569, %v571
        %578 = vrot.lane.b32.xlu0 %v422, 126
        %v579 = vpop.permute.xlu0 %578
        %580 = vrot.lane.b32.xlu0 %v423, 126
        %v581 = vpop.permute.xlu0 %580
        %582 = vrot.lane.b32.xlu0 %v424, 126
        %v583 = vpop.permute.xlu0 %582
        %vm584 = vcmask 1031168
        %v585 = vsel %vm584, %v579, %v581
        %v586 = vsel %vm584, %v581, %v583
        %590 = vrot.lane.b32.xlu0 %v445, 112
        %v591 = vpop.permute.xlu0 %590
        %592 = vrot.lane.b32.xlu0 %v446, 112
        %v593 = vpop.permute.xlu0 %592
        %594 = vrot.lane.b32.xlu0 %v447, 112
        %v595 = vpop.permute.xlu0 %594
        %vm596 = vcmask 916480
        %v597 = vsel %vm596, %v591, %v593
        %v598 = vsel %vm596, %v593, %v595
        %602 = vrot.lane.b32.xlu0 %v468, 111
        %v603 = vpop.permute.xlu0 %602
        %604 = vrot.lane.b32.xlu0 %v469, 111
        %v605 = vpop.permute.xlu0 %604
        %606 = vrot.lane.b32.xlu0 %v470, 111
        %v607 = vpop.permute.xlu0 %606
        %vm608 = vcmask 908288
        %v609 = vsel %vm608, %v603, %v605
        %v610 = vsel %vm608, %v605, %v607
        %614 = vrot.lane.b32.xlu0 %v491, 110
        %v615 = vpop.permute.xlu0 %614
        %616 = vrot.lane.b32.xlu0 %v492, 110
        %v617 = vpop.permute.xlu0 %616
        %618 = vrot.lane.b32.xlu0 %v493, 110
        %v619 = vpop.permute.xlu0 %618
        %vm620 = vcmask 900096
        %v621 = vsel %vm620, %v615, %v617
        %v622 = vsel %vm620, %v617, %v619
        %626 = vrot.lane.b32.xlu0 %v514, 96
        %v627 = vpop.permute.xlu0 %626
        %628 = vrot.lane.b32.xlu0 %v515, 96
        %v629 = vpop.permute.xlu0 %628
        %630 = vrot.lane.b32.xlu0 %v516, 96
        %v631 = vpop.permute.xlu0 %630
        %vm632 = vcmask 785408
        %v633 = vsel %vm632, %v627, %v629
        %v634 = vsel %vm632, %v629, %v631
        %638 = vrot.lane.b32.xlu0 %v537, 95
        %v639 = vpop.permute.xlu0 %638
        %640 = vrot.lane.b32.xlu0 %v538, 95
        %v641 = vpop.permute.xlu0 %640
        %642 = vrot.lane.b32.xlu0 %v539, 95
        %v643 = vpop.permute.xlu0 %642
        %vm644 = vcmask 777216
        %v645 = vsel %vm644, %v639, %v641
        %v646 = vsel %vm644, %v641, %v643
        %650 = vrot.lane.b32.xlu0 %v560, 94
        %v651 = vpop.permute.xlu0 %650
        %652 = vrot.lane.b32.xlu0 %v561, 94
        %v653 = vpop.permute.xlu0 %652
        %654 = vrot.lane.b32.xlu0 %v562, 94
        %v655 = vpop.permute.xlu0 %654
        %vm656 = vcmask 769024
        %v657 = vsel %vm656, %v651, %v653
        %v658 = vsel %vm656, %v653, %v655
        %v659 = vld [vmem:[%s353] sm:$0x3]
        %663 = vrot.lane.b32.xlu0 %v376, 97
        %v664 = vpop.permute.xlu0 %663
        %665 = vrot.lane.b32.xlu0 %v377, 97
        %v666 = vpop.permute.xlu0 %665
        %667 = vrot.lane.b32.xlu0 %v378, 97
        %v668 = vpop.permute.xlu0 %667
        %669 = vrot.lane.b32.xlu0 %v573, 97
        %v670 = vpop.permute.xlu0 %669
        %671 = vrot.lane.b32.xlu0 %v574, 97
        %v672 = vpop.permute.xlu0 %671
        %673 = vrot.lane.b32.xlu0 %v571, 97
        %v674 = vpop.permute.xlu0 %673
        %675 = vrot.lane.b32.xlu0 %v585, 97
        %v676 = vpop.permute.xlu0 %675
        %677 = vrot.lane.b32.xlu0 %v586, 97
        %v678 = vpop.permute.xlu0 %677
        %679 = vrot.lane.b32.xlu0 %v583, 97
        %v680 = vpop.permute.xlu0 %679
        %681 = vrot.lane.b32.xlu0 %v597, 97
        %v682 = vpop.permute.xlu0 %681
        %683 = vrot.lane.b32.xlu0 %v598, 97
        %v684 = vpop.permute.xlu0 %683
        %685 = vrot.lane.b32.xlu0 %v595, 97
        %v686 = vpop.permute.xlu0 %685
        %687 = vrot.lane.b32.xlu0 %v609, 97
        %v688 = vpop.permute.xlu0 %687
        %689 = vrot.lane.b32.xlu0 %v610, 97
        %v690 = vpop.permute.xlu0 %689
        %691 = vrot.lane.b32.xlu0 %v607, 97
        %v692 = vpop.permute.xlu0 %691
        %693 = vrot.lane.b32.xlu0 %v621, 97
        %v694 = vpop.permute.xlu0 %693
        %695 = vrot.lane.b32.xlu0 %v622, 97
        %v696 = vpop.permute.xlu0 %695
        %697 = vrot.lane.b32.xlu0 %v619, 97
        %v698 = vpop.permute.xlu0 %697
        %699 = vrot.lane.b32.xlu0 %v633, 97
        %v700 = vpop.permute.xlu0 %699
        %701 = vrot.lane.b32.xlu0 %v634, 97
        %v702 = vpop.permute.xlu0 %701
        %703 = vrot.lane.b32.xlu0 %v631, 97
        %v704 = vpop.permute.xlu0 %703
        %705 = vrot.lane.b32.xlu0 %v645, 97
        %v706 = vpop.permute.xlu0 %705
        %707 = vrot.lane.b32.xlu0 %v646, 97
        %v708 = vpop.permute.xlu0 %707
        %709 = vrot.lane.b32.xlu0 %v643, 97
        %v710 = vpop.permute.xlu0 %709
        %711 = vrot.lane.b32.xlu0 %v657, 97
        %v712 = vpop.permute.xlu0 %711
        %713 = vrot.lane.b32.xlu0 %v658, 97
        %v714 = vpop.permute.xlu0 %713
        %715 = vrot.lane.b32.xlu0 %v655, 97
        %v716 = vpop.permute.xlu0 %715
        %vm717 = vcmask 793600
        %v718 = vsel %vm717, %v664, %v666
        %v719 = vsel %vm717, %v666, %v668
        %v720 = vsel %vm717, %v670, %v672
        %v721 = vsel %vm717, %v672, %v674
        %v722 = vsel %vm717, %v676, %v678
        %v723 = vsel %vm717, %v678, %v680
        %v724 = vsel %vm717, %v682, %v684
        %v725 = vsel %vm717, %v684, %v686
        %v726 = vsel %vm717, %v688, %v690
        %v727 = vsel %vm717, %v690, %v692
        %v728 = vsel %vm717, %v694, %v696
        %v729 = vsel %vm717, %v696, %v698
        %v730 = vsel %vm717, %v700, %v702
        %v731 = vsel %vm717, %v702, %v704
        %v732 = vsel %vm717, %v706, %v708
        %v733 = vsel %vm717, %v708, %v710
        %v734 = vsel %vm717, %v712, %v714
        %v735 = vsel %vm717, %v714, %v716
        %vm754 = vcmask 588800
        %v756 = vsel %vm754, %v659, 0
        %758 = vmatprep.subr.mxu0 %v719
        %759 = vmatpush1.msra.mxu0 %v718
        %760 = vmatprep.subr.mxu0 %v721
        %761 = vmatpush1.msra.mxu0 %v720
        %762 = vmatprep.subr.mxu0 %v723
        %763 = vmatpush1.msra.mxu0 %v722
        %764 = vmatprep.subr.mxu0 %v725
        %765 = vmatpush1.msra.mxu0 %v724
        %766 = vmatprep.subr.mxu0 %v727
        %767 = vmatpush1.msra.mxu0 %v726
        %768 = vmatprep.subr.mxu0 %v729
        %769 = vmatpush1.msra.mxu0 %v728
        %770 = vmatprep.subr.mxu0 %v731
        %771 = vmatpush1.msra.mxu0 %v730
        %772 = vmatprep.subr.mxu0 %v733
        %773 = vmatpush1.msra.mxu0 %v732
        %774 = vmatprep.subr.mxu0 %v735
        %775 = vmatpush1.msra.mxu0 %v734
        %776 = vmatprep.subr.mxu0 0.0
        %777 = vmatpush1.msra.mxu0 0.0
        %778 = vmatprep.subr.mxu0 0.0
        %779 = vmatpush1.msra.mxu0 0.0
        %780 = vmatprep.subr.mxu0 0.0
        %781 = vmatpush1.msra.mxu0 0.0
        %782 = vmatprep.subr.mxu0 0.0
        %783 = vmatpush1.msra.mxu0 0.0
        %784 = vmatprep.subr.mxu0 0.0
        %785 = vmatpush1.msra.mxu0 0.0
        %786 = vmatprep.subr.mxu0 0.0
        %787 = vmatpush1.msra.mxu0 0.0
        %788 = vmatprep.subr.mxu0 0.0
        %789 = vmatpush1.msra.mxu0 0.0
        %790 = vmatprep.subr.mxu0 0.0
        %791 = vmatpush1.msra.mxu0 0.0
        %792 = vmatprep.subr.mxu0 0.0
        %793 = vmatpush1.msra.mxu0 0.0
        %794 = vmatprep.subr.mxu0 0.0
        %795 = vmatpush1.msra.mxu0 0.0
        %796 = vmatprep.subr.mxu0 0.0
        %797 = vmatpush1.msra.mxu0 0.0
        %798 = vmatprep.subr.mxu0 0.0
        %799 = vmatpush1.msra.mxu0 0.0
        %800 = vmatprep.subr.mxu0 0.0
        %801 = vmatpush1.msra.mxu0 0.0
        %802 = vmatprep.subr.mxu0 0.0
        %803 = vmatpush1.msra.mxu0 0.0
        %804 = vmatprep.subr.mxu0 0.0
        %805 = vmatpush1.msra.mxu0 0.0
        %806 = vmatprep.subr.mxu0 0.0
        %807 = vmatpush1.msra.mxu0 0.0
        %808 = vmatprep.subr.mxu0 0.0
        %809 = vmatpush1.msra.mxu0 0.0
        %810 = vmatprep.subr.mxu0 0.0
        %811 = vmatpush1.msra.mxu0 0.0
        %812 = vmatprep.subr.mxu0 0.0
        %813 = vmatpush1.msra.mxu0 0.0
        %814 = vmatprep.subr.mxu0 0.0
        %815 = vmatpush1.msra.mxu0 0.0
        %816 = vmatprep.subr.mxu0 0.0
        %817 = vmatpush1.msra.mxu0 0.0
        %818 = vmatprep.subr.mxu0 0.0
        %819 = vmatpush1.msra.mxu0 0.0
        %820 = vmatprep.subr.mxu0 0.0
        %821 = vmatpush1.msra.mxu0 0.0
        %822 = vmatprep.mubr.f32.mxu0 0.0
        %823 = vmatmul.mubr.f32.gmra.mrb[0].mxu0 %v756
        %v824 = vpop.f32.mrb[0].mxu0
        %v825 = vadd.f32 0.0, %v824
        %v826 = vpop.f32.mrb[0].mxu0
        %v827 = vadd.f32 0.0, %v826
        %828 = vdwg.mxu0
        %s829 = sld [smem:[#allocation8 + %s34]]
        %v830 = vstv %s829
        %v831 = vadd.f32 %v825, %v830
        %v832 = vadd.f32 %v827, %v830
        %v833 = vxor.u32 %v831, 2147483648
        %v834 = vxor.u32 %v832, 2147483648
        %v835 = vmul.f32 %v833, 1.442695
        %v836 = vpow.pop %v835
        %v837 = vmul.f32 %v834, 1.442695
        %v838 = vpow.pop %v837
        %v839 = vadd.f32 %v836, 1.0
        %v840 = vadd.f32 %v838, 1.0
        %v841 = vrcp.pop %v839
        %v842 = vmul.f32 1.0, %v841
        %v843 = vrcp.pop %v840
        %v844 = vmul.f32 1.0, %v843
        %v845 = vmul.f32 %v842, 2.0
        %v846 = vmul.f32 %v844, 2.0
        %s847 = sadd.s32 %s34, 1
        %s848 = sld [smem:[#allocation8 + %s847]]
        %v849 = vstv %s848
        %v850 = vadd.f32 %v825, %v849
        %v851 = vadd.f32 %v827, %v849
        %v852 = vxor.u32 %v850, 2147483648
        %v853 = vxor.u32 %v851, 2147483648
        %v854 = vmul.f32 %v852, 1.442695
        %v855 = vpow.pop %v854
        %v856 = vmul.f32 %v853, 1.442695
        %v857 = vpow.pop %v856
        %v858 = vadd.f32 %v855, 1.0
        %v859 = vadd.f32 %v857, 1.0
        %v860 = vrcp.pop %v858
        %v861 = vmul.f32 1.0, %v860
        %v862 = vrcp.pop %v859
        %v863 = vmul.f32 1.0, %v862
        %v864 = vmul.f32 %v861, 2.0
        %v865 = vmul.f32 %v863, 2.0
        %869 = vrot.lane.b32.xlu0 %v354, 112
        %v870 = vpop.permute.xlu0 %869
        %871 = vrot.lane.b32.xlu0 %v355, 112
        %v872 = vpop.permute.xlu0 %871
        %873 = vrot.lane.b32.xlu0 %v356, 112
        %v874 = vpop.permute.xlu0 %873
        %v875 = vsel %vm596, %v870, %v872
        %v876 = vsel %vm596, %v872, %v874
        %v880 = vadd.f32 %v354, %v875
        %v881 = vadd.f32 %v355, %v876
        %v882 = vadd.f32 %v356, %v874
        %883 = vrot.lane.b32.xlu0 %v354, 96
        %v884 = vpop.permute.xlu0 %883
        %885 = vrot.lane.b32.xlu0 %v355, 96
        %v886 = vpop.permute.xlu0 %885
        %887 = vrot.lane.b32.xlu0 %v356, 96
        %v888 = vpop.permute.xlu0 %887
        %v889 = vsel %vm632, %v884, %v886
        %v890 = vsel %vm632, %v886, %v888
        %v894 = vadd.f32 %v880, %v889
        %v895 = vadd.f32 %v881, %v890
        %v896 = vadd.f32 %v882, %v888
        %s897 = scalar_lea.vmem [#allocation6], 20
        %v898 = vld [vmem:[%s897] ss:$8 sm:$0x3]
        %v900 = vlaneseq
        %v901 = vshrl.u32 %v900, 7
        %v902 = vsub.s32 0, %v901
        %v903 = vrot.slane %v898, %v902
        %v904 = vlaneseq
        %v905 = vshrl.u32 %v904, 7
        %v906 = vsub.s32 1, %v905
        %v907 = vrot.slane %v898, %v906
        %908 = vrot.lane.b32.xlu0 %v903, 33
        %v909 = vpop.permute.xlu0 %908
        %910 = vrot.lane.b32.xlu0 %v907, 33
        %v911 = vpop.permute.xlu0 %910
        %v912 = vsel %vm417, %v909, %v911
        %v916 = vmul.f32 %v894, %v909
        %v917 = vmul.f32 %v895, %v912
        %v918 = vmul.f32 %v896, %v911
        %922 = vrot.lane.b32.xlu0 %v916, 127
        %v923 = vpop.permute.xlu0 %922
        %924 = vrot.lane.b32.xlu0 %v917, 127
        %v925 = vpop.permute.xlu0 %924
        %926 = vrot.lane.b32.xlu0 %v918, 127
        %v927 = vpop.permute.xlu0 %926
        %v928 = vsel %vm572, %v923, %v925
        %v929 = vsel %vm572, %v925, %v927
        %v933 = vadd.f32 %v894, %v928
        %v934 = vadd.f32 %v895, %v929
        %v935 = vadd.f32 %v896, %v927
        %s936 = scalar_lea.vmem [#allocation6], 18
        %v937 = vld [vmem:[%s936] ss:$8 sm:$0x3]
        %v939 = vlaneseq
        %v940 = vshrl.u32 %v939, 7
        %v941 = vsub.s32 0, %v940
        %v942 = vrot.slane %v937, %v941
        %v943 = vlaneseq
        %v944 = vshrl.u32 %v943, 7
        %v945 = vsub.s32 1, %v944
        %v946 = vrot.slane %v937, %v945
        %947 = vrot.lane.b32.xlu0 %v942, 31
        %v948 = vpop.permute.xlu0 %947
        %949 = vrot.lane.b32.xlu0 %v946, 31
        %v950 = vpop.permute.xlu0 %949
        %v951 = vsel %vm371, %v948, %v950
        %v955 = vmul.f32 %v894, %v948
        %v956 = vmul.f32 %v895, %v951
        %v957 = vmul.f32 %v896, %v950
        %961 = vrot.lane.b32.xlu0 %v955, 1
        %v962 = vpop.permute.xlu0 %961
        %963 = vrot.lane.b32.xlu0 %v956, 1
        %v964 = vpop.permute.xlu0 %963
        %965 = vrot.lane.b32.xlu0 %v957, 1
        %v966 = vpop.permute.xlu0 %965
        %vm967 = vcmask 7168
        %v968 = vsel %vm967, %v962, %v964
        %v969 = vsel %vm967, %v964, %v966
        %v973 = vadd.f32 %v933, %v962
        %v974 = vadd.f32 %v934, %v968
        %v975 = vadd.f32 %v935, %v969
        %s976 = scalar_lea.vmem [#allocation6], 22
        %v977 = vld [vmem:[%s976] ss:$8 sm:$0x3]
        %v979 = vlaneseq
        %v980 = vshrl.u32 %v979, 7
        %v981 = vsub.s32 0, %v980
        %v982 = vrot.slane %v977, %v981
        %v983 = vlaneseq
        %v984 = vshrl.u32 %v983, 7
        %v985 = vsub.s32 1, %v984
        %v986 = vrot.slane %v977, %v985
        %992 = vrot.lane.b32.xlu0 %v894, 96
        %v993 = vpop.permute.xlu0 %992
        %994 = vrot.lane.b32.xlu0 %v895, 96
        %v995 = vpop.permute.xlu0 %994
        %996 = vrot.lane.b32.xlu0 %v896, 96
        %v997 = vpop.permute.xlu0 %996
        %v998 = vsel %vm632, %v993, %v995
        %v999 = vsel %vm632, %v995, %v997
        %v1002 = vmul.f32 %v982, %v998
        %v1003 = vmul.f32 %v986, %v999
        %1006 = vrot.lane.b32.xlu0 %v1002, 32
        %v1007 = vpop.permute.xlu0 %1006
        %1008 = vrot.lane.b32.xlu0 %v1003, 32
        %v1009 = vpop.permute.xlu0 %1008
        %v1010 = vsel %vm394, %v1007, %v1009
        %v1014 = vadd.f32 %v973, %v1007
        %v1015 = vadd.f32 %v974, %v1010
        %v1016 = vadd.f32 %v975, %v1009
        %s1017 = scalar_lea.vmem [#allocation6], 32
        %v1018 = vld [vmem:[%s1017] ss:$8 sm:$0x3]
        %v1020 = vlaneseq
        %v1021 = vshrl.u32 %v1020, 7
        %v1022 = vsub.s32 0, %v1021
        %v1023 = vrot.slane %v1018, %v1022
        %v1024 = vlaneseq
        %v1025 = vshrl.u32 %v1024, 7
        %v1026 = vsub.s32 1, %v1025
        %v1027 = vrot.slane %v1018, %v1026
        %v1030 = vmul.f32 %v1023, %v998
        %v1031 = vmul.f32 %v1027, %v999
        %1034 = vrot.lane.b32.xlu0 %v1030, 32
        %v1035 = vpop.permute.xlu0 %1034
        %1036 = vrot.lane.b32.xlu0 %v1031, 32
        %v1037 = vpop.permute.xlu0 %1036
        %v1038 = vsel %vm394, %v1035, %v1037
        %v1042 = vadd.f32 %v1014, %v1035
        %v1043 = vadd.f32 %v1015, %v1038
        %v1044 = vadd.f32 %v1016, %v1037
        %v1045 = vmul.f32 %v1042, 0.11111111
        %v1046 = vmul.f32 %v1043, 0.11111111
        %v1047 = vmul.f32 %v1044, 0.11111111
        %1051 = vrot.lane.b32.xlu0 %v1045, 16
        %v1052 = vpop.permute.xlu0 %1051
        %1053 = vrot.lane.b32.xlu0 %v1046, 16
        %v1054 = vpop.permute.xlu0 %1053
        %1055 = vrot.lane.b32.xlu0 %v1047, 16
        %v1056 = vpop.permute.xlu0 %1055
        %vm1057 = vcmask 130048
        %v1058 = vsel %vm1057, %v1052, %v1054
        %v1059 = vsel %vm1057, %v1054, %v1056
        %v1063 = vsub.f32 %v354, %v1052
        %v1064 = vsub.f32 %v355, %v1058
        %v1065 = vsub.f32 %v356, %v1059
        %v1066 = vlaneseq
        %v1067 = vshrl.u32 %v1066, 7
        %v1068 = vsub.s32 0, %v1067
        %v1069 = vrot.slane %v845, %v1068
        %v1070 = vlaneseq
        %v1071 = vshrl.u32 %v1070, 7
        %v1072 = vsub.s32 0, %v1071
        %v1073 = vrot.slane %v846, %v1072
        %1077 = vrot.lane.b32.xlu0 %v1063, 80
        %v1078 = vpop.permute.xlu0 %1077
        %1079 = vrot.lane.b32.xlu0 %v1064, 80
        %v1080 = vpop.permute.xlu0 %1079
        %1081 = vrot.lane.b32.xlu0 %v1065, 80
        %v1082 = vpop.permute.xlu0 %1081
        %vm1083 = vcmask 654336
        %v1084 = vsel %vm1083, %v1078, %v1080
        %v1085 = vsel %vm1083, %v1080, %v1082
        %v1088 = vmul.f32 %v1069, %v1084
        %v1089 = vmul.f32 %v1073, %v1085
        %1090 = vst [vmem:[%s335] sm:$0xff] %v1088
        %1091 = vst [vmem:[%s335 + $0x8] sm:$0xff] %v1089
        %1092 = vrot.lane.b32.xlu0 %v354, 80
        %v1093 = vpop.permute.xlu0 %1092
        %1094 = vrot.lane.b32.xlu0 %v355, 80
        %v1095 = vpop.permute.xlu0 %1094
        %1096 = vrot.lane.b32.xlu0 %v356, 80
        %v1097 = vpop.permute.xlu0 %1096
        %v1098 = vsel %vm1083, %v1093, %v1095
        %v1099 = vsel %vm1083, %v1095, %v1097
        %v1103 = vadd.f32 %v894, %v1098
        %v1104 = vadd.f32 %v895, %v1099
        %v1105 = vadd.f32 %v896, %v1097
        %1106 = vrot.lane.b32.xlu0 %v354, 64
        %v1107 = vpop.permute.xlu0 %1106
        %1108 = vrot.lane.b32.xlu0 %v355, 64
        %v1109 = vpop.permute.xlu0 %1108
        %1110 = vrot.lane.b32.xlu0 %v356, 64
        %v1111 = vpop.permute.xlu0 %1110
        %v1112 = vsel %vm532, %v1107, %v1109
        %v1113 = vsel %vm532, %v1109, %v1111
        %v1117 = vadd.f32 %v1103, %v1112
        %v1118 = vadd.f32 %v1104, %v1113
        %v1119 = vadd.f32 %v1105, %v1111
        %v1120 = vld [vmem:[%s897] ss:$8 sm:$0x3]
        %v1122 = vlaneseq
        %v1123 = vshrl.u32 %v1122, 7
        %v1124 = vsub.s32 0, %v1123
        %v1125 = vrot.slane %v1120, %v1124
        %v1126 = vlaneseq
        %v1127 = vshrl.u32 %v1126, 7
        %v1128 = vsub.s32 1, %v1127
        %v1129 = vrot.slane %v1120, %v1128
        %1130 = vrot.lane.b32.xlu0 %v1125, 17
        %v1131 = vpop.permute.xlu0 %1130
        %1132 = vrot.lane.b32.xlu0 %v1129, 17
        %v1133 = vpop.permute.xlu0 %1132
        %vm1134 = vcmask 138240
        %v1135 = vsel %vm1134, %v1131, %v1133
        %v1139 = vmul.f32 %v1117, %v1131
        %v1140 = vmul.f32 %v1118, %v1135
        %v1141 = vmul.f32 %v1119, %v1133
        %1145 = vrot.lane.b32.xlu0 %v1139, 127
        %v1146 = vpop.permute.xlu0 %1145
        %1147 = vrot.lane.b32.xlu0 %v1140, 127
        %v1148 = vpop.permute.xlu0 %1147
        %1149 = vrot.lane.b32.xlu0 %v1141, 127
        %v1150 = vpop.permute.xlu0 %1149
        %v1151 = vsel %vm572, %v1146, %v1148
        %v1152 = vsel %vm572, %v1148, %v1150
        %v1156 = vadd.f32 %v1117, %v1151
        %v1157 = vadd.f32 %v1118, %v1152
        %v1158 = vadd.f32 %v1119, %v1150
        %v1159 = vld [vmem:[%s936] ss:$8 sm:$0x3]
        %v1161 = vlaneseq
        %v1162 = vshrl.u32 %v1161, 7
        %v1163 = vsub.s32 0, %v1162
        %v1164 = vrot.slane %v1159, %v1163
        %v1165 = vlaneseq
        %v1166 = vshrl.u32 %v1165, 7
        %v1167 = vsub.s32 1, %v1166
        %v1168 = vrot.slane %v1159, %v1167
        %1169 = vrot.lane.b32.xlu0 %v1164, 15
        %v1170 = vpop.permute.xlu0 %1169
        %1171 = vrot.lane.b32.xlu0 %v1168, 15
        %v1172 = vpop.permute.xlu0 %1171
        %vm1173 = vcmask 121856
        %v1174 = vsel %vm1173, %v1170, %v1172
        %v1178 = vmul.f32 %v1117, %v1170
        %v1179 = vmul.f32 %v1118, %v1174
        %v1180 = vmul.f32 %v1119, %v1172
        %1184 = vrot.lane.b32.xlu0 %v1178, 1
        %v1185 = vpop.permute.xlu0 %1184
        %1186 = vrot.lane.b32.xlu0 %v1179, 1
        %v1187 = vpop.permute.xlu0 %1186
        %1188 = vrot.lane.b32.xlu0 %v1180, 1
        %v1189 = vpop.permute.xlu0 %1188
        %v1190 = vsel %vm967, %v1185, %v1187
        %v1191 = vsel %vm967, %v1187, %v1189
        %v1195 = vadd.f32 %v1156, %v1185
        %v1196 = vadd.f32 %v1157, %v1190
        %v1197 = vadd.f32 %v1158, %v1191
        %s1198 = scalar_lea.vmem [#allocation6], 21
        %v1199 = vld [vmem:[%s1198] ss:$8 sm:$0x3]
        %v1201 = vlaneseq
        %v1202 = vshrl.u32 %v1201, 7
        %v1203 = vsub.s32 0, %v1202
        %v1204 = vrot.slane %v1199, %v1203
        %v1205 = vlaneseq
        %v1206 = vshrl.u32 %v1205, 7
        %v1207 = vsub.s32 1, %v1206
        %v1208 = vrot.slane %v1199, %v1207
        %1209 = vrot.lane.b32.xlu0 %v1204, 18
        %v1210 = vpop.permute.xlu0 %1209
        %1211 = vrot.lane.b32.xlu0 %v1208, 18
        %v1212 = vpop.permute.xlu0 %1211
        %vm1213 = vcmask 146432
        %v1214 = vsel %vm1213, %v1210, %v1212
        %v1218 = vmul.f32 %v1117, %v1210
        %v1219 = vmul.f32 %v1118, %v1214
        %v1220 = vmul.f32 %v1119, %v1212
        %1224 = vrot.lane.b32.xlu0 %v1218, 126
        %v1225 = vpop.permute.xlu0 %1224
        %1226 = vrot.lane.b32.xlu0 %v1219, 126
        %v1227 = vpop.permute.xlu0 %1226
        %1228 = vrot.lane.b32.xlu0 %v1220, 126
        %v1229 = vpop.permute.xlu0 %1228
        %v1230 = vsel %vm584, %v1225, %v1227
        %v1231 = vsel %vm584, %v1227, %v1229
        %v1235 = vadd.f32 %v1195, %v1230
        %v1236 = vadd.f32 %v1196, %v1231
        %v1237 = vadd.f32 %v1197, %v1229
        %s1238 = scalar_lea.vmem [#allocation6], 17
        %v1239 = vld [vmem:[%s1238] ss:$8 sm:$0x3]
        %v1241 = vlaneseq
        %v1242 = vshrl.u32 %v1241, 7
        %v1243 = vsub.s32 0, %v1242
        %v1244 = vrot.slane %v1239, %v1243
        %v1245 = vlaneseq
        %v1246 = vshrl.u32 %v1245, 7
        %v1247 = vsub.s32 1, %v1246
        %v1248 = vrot.slane %v1239, %v1247
        %1249 = vrot.lane.b32.xlu0 %v1244, 14
        %v1250 = vpop.permute.xlu0 %1249
        %1251 = vrot.lane.b32.xlu0 %v1248, 14
        %v1252 = vpop.permute.xlu0 %1251
        %vm1253 = vcmask 113664
        %v1254 = vsel %vm1253, %v1250, %v1252
        %v1258 = vmul.f32 %v1117, %v1250
        %v1259 = vmul.f32 %v1118, %v1254
        %v1260 = vmul.f32 %v1119, %v1252
        %1264 = vrot.lane.b32.xlu0 %v1258, 2
        %v1265 = vpop.permute.xlu0 %1264
        %1266 = vrot.lane.b32.xlu0 %v1259, 2
        %v1267 = vpop.permute.xlu0 %1266
        %1268 = vrot.lane.b32.xlu0 %v1260, 2
        %v1269 = vpop.permute.xlu0 %1268
        %vm1270 = vcmask 15360
        %v1271 = vsel %vm1270, %v1265, %v1267
        %v1272 = vsel %vm1270, %v1267, %v1269
        %v1276 = vadd.f32 %v1235, %v1265
        %v1277 = vadd.f32 %v1236, %v1271
        %v1278 = vadd.f32 %v1237, %v1272
        %v1279 = vld [vmem:[%s976] ss:$8 sm:$0x3]
        %v1280 = vmul.f32 %v1279, 2.0
        %v1282 = vlaneseq
        %v1283 = vshrl.u32 %v1282, 7
        %v1284 = vsub.s32 0, %v1283
        %v1285 = vrot.slane %v1280, %v1284
        %v1286 = vlaneseq
        %v1287 = vshrl.u32 %v1286, 7
        %v1288 = vsub.s32 1, %v1287
        %v1289 = vrot.slane %v1280, %v1288
        %1295 = vrot.lane.b32.xlu0 %v1117, 112
        %v1296 = vpop.permute.xlu0 %1295
        %1297 = vrot.lane.b32.xlu0 %v1118, 112
        %v1298 = vpop.permute.xlu0 %1297
        %1299 = vrot.lane.b32.xlu0 %v1119, 112
        %v1300 = vpop.permute.xlu0 %1299
        %v1301 = vsel %vm596, %v1296, %v1298
        %v1302 = vsel %vm596, %v1298, %v1300
        %v1305 = vmul.f32 %v1285, %v1301
        %v1306 = vmul.f32 %v1289, %v1302
        %1309 = vrot.lane.b32.xlu0 %v1305, 16
        %v1310 = vpop.permute.xlu0 %1309
        %1311 = vrot.lane.b32.xlu0 %v1306, 16
        %v1312 = vpop.permute.xlu0 %1311
        %v1313 = vsel %vm1057, %v1310, %v1312
        %v1317 = vadd.f32 %v1276, %v1310
        %v1318 = vadd.f32 %v1277, %v1313
        %v1319 = vadd.f32 %v1278, %v1312
        %v1320 = vld [vmem:[%s1017] ss:$8 sm:$0x3]
        %v1321 = vmul.f32 %v1320, 2.0
        %v1323 = vlaneseq
        %v1324 = vshrl.u32 %v1323, 7
        %v1325 = vsub.s32 0, %v1324
        %v1326 = vrot.slane %v1321, %v1325
        %v1327 = vlaneseq
        %v1328 = vshrl.u32 %v1327, 7
        %v1329 = vsub.s32 1, %v1328
        %v1330 = vrot.slane %v1321, %v1329
        %v1333 = vmul.f32 %v1326, %v1301
        %v1334 = vmul.f32 %v1330, %v1302
        %1337 = vrot.lane.b32.xlu0 %v1333, 16
        %v1338 = vpop.permute.xlu0 %1337
        %1339 = vrot.lane.b32.xlu0 %v1334, 16
        %v1340 = vpop.permute.xlu0 %1339
        %v1341 = vsel %vm1057, %v1338, %v1340
        %v1345 = vadd.f32 %v1317, %v1338
        %v1346 = vadd.f32 %v1318, %v1341
        %v1347 = vadd.f32 %v1319, %v1340
        %s1348 = scalar_lea.vmem [#allocation6], 23
        %v1349 = vld [vmem:[%s1348] ss:$8 sm:$0x3]
        %v1351 = vlaneseq
        %v1352 = vshrl.u32 %v1351, 7
        %v1353 = vsub.s32 0, %v1352
        %v1354 = vrot.slane %v1349, %v1353
        %v1355 = vlaneseq
        %v1356 = vshrl.u32 %v1355, 7
        %v1357 = vsub.s32 1, %v1356
        %v1358 = vrot.slane %v1349, %v1357
        %1361 = vrot.lane.b32.xlu0 %v1117, 113
        %v1362 = vpop.permute.xlu0 %1361
        %1363 = vrot.lane.b32.xlu0 %v1118, 113
        %v1364 = vpop.permute.xlu0 %1363
        %1365 = vrot.lane.b32.xlu0 %v1119, 113
        %v1366 = vpop.permute.xlu0 %1365
        %vm1367 = vcmask 924672
        %v1368 = vsel %vm1367, %v1362, %v1364
        %v1369 = vsel %vm1367, %v1364, %v1366
        %v1372 = vmul.f32 %v1354, %v1368
        %v1373 = vmul.f32 %v1358, %v1369
        %1376 = vrot.lane.b32.xlu0 %v1372, 16
        %v1377 = vpop.permute.xlu0 %1376
        %1378 = vrot.lane.b32.xlu0 %v1373, 16
        %v1379 = vpop.permute.xlu0 %1378
        %v1380 = vsel %vm1057, %v1377, %v1379
        %v1384 = vadd.f32 %v1345, %v1377
        %v1385 = vadd.f32 %v1346, %v1380
        %v1386 = vadd.f32 %v1347, %v1379
        %s1387 = scalar_lea.vmem [#allocation6], 33
        %v1388 = vld [vmem:[%s1387] ss:$8 sm:$0x3]
        %v1390 = vlaneseq
        %v1391 = vshrl.u32 %v1390, 7
        %v1392 = vsub.s32 0, %v1391
        %v1393 = vrot.slane %v1388, %v1392
        %v1394 = vlaneseq
        %v1395 = vshrl.u32 %v1394, 7
        %v1396 = vsub.s32 1, %v1395
        %v1397 = vrot.slane %v1388, %v1396
        %1400 = vrot.lane.b32.xlu0 %v1117, 111
        %v1401 = vpop.permute.xlu0 %1400
        %1402 = vrot.lane.b32.xlu0 %v1118, 111
        %v1403 = vpop.permute.xlu0 %1402
        %1404 = vrot.lane.b32.xlu0 %v1119, 111
        %v1405 = vpop.permute.xlu0 %1404
        %v1406 = vsel %vm608, %v1401, %v1403
        %v1407 = vsel %vm608, %v1403, %v1405
        %v1410 = vmul.f32 %v1393, %v1406
        %v1411 = vmul.f32 %v1397, %v1407
        %1414 = vrot.lane.b32.xlu0 %v1410, 16
        %v1415 = vpop.permute.xlu0 %1414
        %1416 = vrot.lane.b32.xlu0 %v1411, 16
        %v1417 = vpop.permute.xlu0 %1416
        %v1418 = vsel %vm1057, %v1415, %v1417
        %v1422 = vadd.f32 %v1384, %v1415
        %v1423 = vadd.f32 %v1385, %v1418
        %v1424 = vadd.f32 %v1386, %v1417
        %v1425 = vmul.f32 %v1422, 0.04
        %v1426 = vmul.f32 %v1423, 0.04
        %v1427 = vmul.f32 %v1424, 0.04
        %1431 = vrot.lane.b32.xlu0 %v1425, 16
        %v1432 = vpop.permute.xlu0 %1431
        %1433 = vrot.lane.b32.xlu0 %v1426, 16
        %v1434 = vpop.permute.xlu0 %1433
        %1435 = vrot.lane.b32.xlu0 %v1427, 16
        %v1436 = vpop.permute.xlu0 %1435
        %v1437 = vsel %vm1057, %v1432, %v1434
        %v1438 = vsel %vm1057, %v1434, %v1436
        %v1442 = vsub.f32 %v1045, %v1432
        %v1443 = vsub.f32 %v1046, %v1437
        %v1444 = vsub.f32 %v1047, %v1438
        %v1445 = vlaneseq
        %v1446 = vshrl.u32 %v1445, 7
        %v1447 = vsub.s32 1, %v1446
        %v1448 = vrot.slane %v864, %v1447
        %v1449 = vlaneseq
        %v1450 = vshrl.u32 %v1449, 7
        %v1451 = vsub.s32 1, %v1450
        %v1452 = vrot.slane %v865, %v1451
        %1456 = vrot.lane.b32.xlu0 %v1442, 96
        %v1457 = vpop.permute.xlu0 %1456
        %1458 = vrot.lane.b32.xlu0 %v1443, 96
        %v1459 = vpop.permute.xlu0 %1458
        %1460 = vrot.lane.b32.xlu0 %v1444, 96
        %v1461 = vpop.permute.xlu0 %1460
        %v1462 = vsel %vm632, %v1457, %v1459
        %v1463 = vsel %vm632, %v1459, %v1461
        %v1466 = vmul.f32 %v1448, %v1462
        %v1467 = vmul.f32 %v1452, %v1463
        %1468 = vst [vmem:[%s342] sm:$0xff] %v1466
        %1469 = vst [vmem:[%s342 + $0x8] sm:$0xff] %v1467
        %1470 = vrot.lane.b32.xlu0 %v1425, 112
        %v1471 = vpop.permute.xlu0 %1470
        %1472 = vrot.lane.b32.xlu0 %v1426, 112
        %v1473 = vpop.permute.xlu0 %1472
        %1474 = vrot.lane.b32.xlu0 %v1427, 112
        %v1475 = vpop.permute.xlu0 %1474
        %v1476 = vsel %vm596, %v1471, %v1473
        %v1477 = vsel %vm596, %v1473, %v1475
        %1480 = vst [vmem:[%s349] sm:$0xff] %v1476
        %1481 = vst [vmem:[%s349 + $0x8] sm:$0xff] %v1477
        %s1482 = sand.u32 %s147, 1
        %s1483 = scalar_lea.sflag [#allocation4], %s1482
        %s1484 = sand.u32 %s147, 1
        %s1485 = smul.addr %s1484, 16
        %s1486 = scalar_lea.vmem [#allocation9], %s1485
        %s1487 = sand.u32 %s29, 1
        %s1488 = scalar_lea.sflag [#allocation11], %s1487
        %s1489 = sand.u32 %s175, 1
        %s1490 = smul.addr %s1489, 16
        %s1491 = scalar_lea.vmem [#allocation10], %s1490
        %s1492 = sand.u32 %s29, 1
        %s1493 = scalar_lea.sflag [#allocation11], %s1492
        %s1494 = sand.u32 %s203, 1
        %s1495 = smul.addr %s1494, 16
        %s1496 = scalar_lea.vmem [#allocation12], %s1495
        // Predicated region
        $region49: #{tpu_custom_call.1} parent=35 // pred_check
          %p1497 = pneg %p157
        $region50: #{tpu_custom_call.1} parent=35 // pred_check_branch
          %1499 = sbr.rel (%p1497) target = $region52
        $region51: #{tpu_custom_call.1} parent=35 // pred_region
          %s1501 = ssub.s32 256, 256
          %1502 = vsyncadd %s1483, %s1501
          %s1503 = smul.addr %s34, 2
          %s1504 = smul.addr %s33, 2
          %s1505 = sadd.s32 %s1503, %s1504
          %s1506 = smul.addr %s1505, 128
          %s1507 = scalar_lea.hbm %s4, %s1506
          %s1509 = sshll.u32 %s1486, 4
          %s1510 = int_to_ptr.vmem [resolvable:$true] %s1509
          %1512 = dma.vmem_to_hbm [thread:$0]  %s1510, 256, %s1507, %s1483
        $region52: #{tpu_custom_call.1} parent=35 // pred_fallthru
          _
        // Predicated region
        $region53: #{tpu_custom_call.1} parent=35 // pred_check
          %p1513 = pneg %p185
        $region54: #{tpu_custom_call.1} parent=35 // pred_check_branch
          %1515 = sbr.rel (%p1513) target = $region56
        $region55: #{tpu_custom_call.1} parent=35 // pred_region
          %s1517 = ssub.s32 256, 256
          %1518 = vsyncadd %s1488, %s1517
          %s1519 = smul.addr %s34, 2
          %s1520 = smul.addr %s33, 2
          %s1521 = sadd.s32 %s1519, %s1520
          %s1522 = smul.addr %s1521, 128
          %s1523 = scalar_lea.hbm %s5, %s1522
          %s1525 = sshll.u32 %s1491, 4
          %s1526 = int_to_ptr.vmem [resolvable:$true] %s1525
          %1528 = dma.vmem_to_hbm [thread:$0]  %s1526, 256, %s1523, %s1488
        $region56: #{tpu_custom_call.1} parent=35 // pred_fallthru
          _
        // Predicated region
        $region57: #{tpu_custom_call.1} parent=35 // pred_check
          %p1529 = pneg %p213
        $region58: #{tpu_custom_call.1} parent=35 // pred_check_branch
          %1531 = sbr.rel (%p1529) target = $region60
        $region59: #{tpu_custom_call.1} parent=35 // pred_region
          %s1533 = ssub.s32 256, 256
          %1534 = vsyncadd %s1493, %s1533
          %s1535 = smul.addr %s34, 2
          %s1536 = smul.addr %s33, 2
          %s1537 = sadd.s32 %s1535, %s1536
          %s1538 = smul.addr %s1537, 128
          %s1539 = scalar_lea.hbm %s6, %s1538
          %s1541 = sshll.u32 %s1496, 4
          %s1542 = int_to_ptr.vmem [resolvable:$true] %s1541
          %1544 = dma.vmem_to_hbm [thread:$0]  %s1542, 256, %s1539, %s1493
        $region60: #{tpu_custom_call.1} parent=35 // pred_fallthru
          _
      $region36: #{tpu_custom_call.1} parent=5 // pred_fallthru
        _
      %p1545 = scmp.le.s32.totalorder 2, %s24
      // Predicated region
      $region61: #{tpu_custom_call.1} parent=5 // pred_check
        %p1546 = pneg %p1545
      $region62: #{tpu_custom_call.1} parent=5 // pred_check_branch
        %1548 = sbr.rel (%p1546) target = $region64
      $region63: #{tpu_custom_call.1} parent=5 // pred_region
        %s1549 = ssub.s32 %s24, 2
        // Predicated region
        $region65: #{tpu_custom_call.1} parent=63 // pred_check
          %p1550 = pneg %p163
        $region66: #{tpu_custom_call.1} parent=63 // pred_check_branch
          %1552 = sbr.rel (%p1550) target = $region68
        $region67: #{tpu_custom_call.1} parent=63 // pred_region
          %s1553 = sand.u32 %s148, 1
          %s1554 = scalar_lea.sflag [#allocation4], %s1553
          %s1555 = sand.u32 %s148, 1
          %s1556 = smul.addr %s1555, 16
          %s1557 = scalar_lea.vmem [#allocation9], %s1556
          %1558 = dma.done %s1554, 256
        $region68: #{tpu_custom_call.1} parent=63 // pred_fallthru
          _
        // Predicated region
        $region69: #{tpu_custom_call.1} parent=63 // pred_check
          %p1559 = pneg %p191
        $region70: #{tpu_custom_call.1} parent=63 // pred_check_branch
          %1561 = sbr.rel (%p1559) target = $region72
        $region71: #{tpu_custom_call.1} parent=63 // pred_region
          %s1562 = sand.u32 %s30, 1
          %s1563 = scalar_lea.sflag [#allocation11], %s1562
          %s1564 = sand.u32 %s176, 1
          %s1565 = smul.addr %s1564, 16
          %s1566 = scalar_lea.vmem [#allocation10], %s1565
          %1567 = dma.done %s1563, 256
        $region72: #{tpu_custom_call.1} parent=63 // pred_fallthru
          _
        // Predicated region
        $region73: #{tpu_custom_call.1} parent=63 // pred_check
          %p1568 = pneg %p219
        $region74: #{tpu_custom_call.1} parent=63 // pred_check_branch
          %1570 = sbr.rel (%p1568) target = $region76
        $region75: #{tpu_custom_call.1} parent=63 // pred_region
          %s1571 = sand.u32 %s30, 1
          %s1572 = scalar_lea.sflag [#allocation11], %s1571
          %s1573 = sand.u32 %s204, 1
          %s1574 = smul.addr %s1573, 16
          %s1575 = scalar_lea.vmem [#allocation12], %s1574
          %1576 = dma.done %s1572, 256
        $region76: #{tpu_custom_call.1} parent=63 // pred_fallthru
          _
      $region64: #{tpu_custom_call.1} parent=5 // pred_fallthru
        _
    $region6: #{tpu_custom_call.1} parent=1 // loop_footer
      %s28 = sadd.s32 1, %s24
    $region7: #{tpu_custom_call.1} parent=1 // loop_footer_branch
      %23 = sbr.rel target = $region3
    $region8: #{tpu_custom_call.1} parent=1 // loop_exit
      _
    %1577 = vsyncpa [#allocation3], 1
    %s1578 = scalar_lea.sflag [#allocation3], 1
    %1579 = vsyncpa %s1578, 1
    %1580 = vsyncpa [#allocation7], 1
    %1581 = vsyncpa [#allocation4], 1
    %s1582 = scalar_lea.sflag [#allocation4], 1
    %1583 = vsyncpa %s1582, 1
    %1584 = vsyncpa [#allocation11], 1
    %s1585 = scalar_lea.sflag [#allocation11], 1
    %1586 = vsyncpa %s1585, 1
    %1587 = vsyncpa [#allocation5], 1
    %s1588 = scalar_lea.sflag [#allocation5], 1
    %1589 = vsyncpa %s1588, 1

</llo_original>
